<compile_context>
chip_gen: v7x
topology: tpu7x:2x2x1
jax: 0.10.0
libtpu: 0.0.40
codegen_flags: <defaults>
</compile_context>

<pallas_src>
import functools

import jax
import jax.numpy as jnp
from jax.experimental import pallas as pl
from jax.experimental.pallas import tpu as pltpu


# --------------------------------------------------------------------------------------
# Kernel
# --------------------------------------------------------------------------------------
def _lstm_last_fc_kernel(x_ref, w_hh_ref, params_ref, out_ref, gates_ref,
                         *, hidden_pad, fut_pad):
    """Hoisted input projection + fully unrolled LSTM recurrence + fc on last h.

    x_ref      : (T, B, D)        time-major input, B padded to a multiple of 8, f32
    w_hh_ref   : (Hp, 4*Hp)       hidden->gates weight, gate order [i, f, o, g], bf16
    params_ref : (16+Hp+8, 4*Hp)  packed f32 slab:
                   rows [0:D)           W_ih^T            (gate order [i,f,o,g], lane-padded per gate)
                   row  8               combined bias b_ih+b_hh (same layout)
                   rows [16:16+Hp)      W_fc^T            (lanes [0:Fp) used, padded rows zero)
                   row  16+Hp           fc bias           (lanes [0:Fp) used)
    out_ref    : (B, Fp)          lane-dense output
    gates_ref  : (T, B, 4*Hp)     VMEM scratch for the hoisted input projection
    """
    Hp, Fp = hidden_pad, fut_pad
    T, B, D = x_ref.shape

    # Unpack the parameter slab (all static, 8-sublane-aligned slices).
    w_ih = params_ref[0:D, :]                        # (D, 4Hp)
    b    = params_ref[8:9, :]                        # (1, 4Hp)
    w_fc = params_ref[16:16 + Hp, 0:Fp]              # (Hp, Fp)
    b_fc = params_ref[16 + Hp:16 + Hp + 1, 0:Fp]     # (1, Fp)

    # ---- Hoisted input projection for all T timesteps (off the serial path). Written to
    # VMEM scratch so the (T, B, 4Hp) block is not held live in vregs across the loop.
    x = x_ref[...]                                   # (T, B, D) f32
    if D == 1:
        # K=1 "GEMM" degenerates to a lane-broadcast multiply on the VPU.
        gates_ref[...] = x * w_ih + b                # (T,B,1)*(1,4Hp)+(1,4Hp)
    else:
        gates_ref[...] = (jnp.dot(x.reshape(T * B, D), w_ih,
                                  preferred_element_type=jnp.float32)
                          .reshape(T, B, 4 * Hp) + b)

    w_hh = w_hh_ref[...]                             # (Hp, 4Hp) bf16

    h = jnp.zeros((B, Hp), jnp.float32)
    c = jnp.zeros((B, Hp), jnp.float32)

    # ---- Fully unrolled recurrence (T is static and tiny). ----
    for t in range(T):
        gates = gates_ref[t] + jnp.dot(h.astype(jnp.bfloat16), w_hh,
                                       preferred_element_type=jnp.float32)  # (B, 4Hp) f32
        # Gate order [i, f, o, g]: one sigmoid region (3*Hp lanes) + one tanh region (Hp).
        sig = jax.nn.sigmoid(gates[:, :3 * Hp])
        g_g = jnp.tanh(gates[:, 3 * Hp:])
        i_g = sig[:, 0 * Hp:1 * Hp]
        f_g = sig[:, 1 * Hp:2 * Hp]
        o_g = sig[:, 2 * Hp:3 * Hp]
        c = f_g * c + i_g * g_g
        h = o_g * jnp.tanh(c)

    out_ref[...] = jnp.dot(h, w_fc, preferred_element_type=jnp.float32) + b_fc


# --------------------------------------------------------------------------------------
# One-time parameter reformat (hoisted out of the per-call path)
# --------------------------------------------------------------------------------------
def prepare_simple_lstm_params(w_ih, w_hh, b_ih, b_hh, w_fc, b_fc,
                               *, hidden_pad=128, fut_pad=128):
    """PyTorch-layout params -> kernel-layout params.  Call ONCE at model init."""
    H = w_hh.shape[1]          # w_hh: (4H, H)
    D = w_ih.shape[1]          # w_ih: (4H, D)
    F = w_fc.shape[0]          # w_fc: (F, H)
    Hp, Fp = hidden_pad, fut_pad
    assert Hp >= H and Fp >= F and D <= 8 and 4 * Hp >= Fp

    def split_ifog(m, axis):
        # PyTorch gate order along `axis` is [i, f, g, o]; return [i, f, o, g].
        i, f, g, o = jnp.split(m, 4, axis=axis)
        return [i, f, o, g]

    def pad_last(a, to):
        return jnp.pad(a, [(0, 0)] * (a.ndim - 1) + [(0, to - a.shape[-1])])

    # Input->gates weight: (4H, D) -> (D, 4Hp), per-gate zero padding to Hp lanes.
    w_ih_t = w_ih.astype(jnp.float32).T                                     # (D, 4H)
    w_ih_p = jnp.concatenate([pad_last(blk, Hp) for blk in split_ifog(w_ih_t, 1)],
                             axis=1)                                        # (D, 4Hp)

    # Hidden->gates weight: (4H, H) -> (Hp, 4Hp) bf16 (MXU-native), zero-padded rows/cols.
    w_hh_t = w_hh.astype(jnp.float32).T                                     # (H, 4H)
    w_hh_p = jnp.concatenate([pad_last(blk, Hp) for blk in split_ifog(w_hh_t, 1)],
                             axis=1)                                        # (H, 4Hp)
    w_hh_p = jnp.pad(w_hh_p, ((0, Hp - H), (0, 0))).astype(jnp.bfloat16)    # (Hp, 4Hp)

    # Combined bias: (4H,) -> (1, 4Hp), zero in padded gate lanes (keeps padded h lanes 0).
    b_comb = (b_ih + b_hh).astype(jnp.float32)
    b_p = jnp.concatenate([pad_last(blk, Hp) for blk in split_ifog(b_comb, 0)],
                          axis=0).reshape(1, 4 * Hp)

    # fc: (F, H) -> (Hp, 4Hp) with only rows [0:H) and lanes [0:F) nonzero.
    w_fc_t = w_fc.astype(jnp.float32).T                                     # (H, F)
    w_fc_p = jnp.pad(w_fc_t, ((0, Hp - H), (0, 4 * Hp - F)))                # (Hp, 4Hp)
    b_fc_p = jnp.pad(b_fc.astype(jnp.float32).reshape(1, F),
                     ((0, 0), (0, 4 * Hp - F)))                             # (1, 4Hp)

    # Pack all small f32 params into one lane-dense slab, each section 8-sublane aligned.
    rows = 16 + Hp + 8
    slab = jnp.zeros((rows, 4 * Hp), jnp.float32)
    slab = slab.at[0:D].set(w_ih_p)
    slab = slab.at[8:9].set(b_p)
    slab = slab.at[16:16 + Hp].set(w_fc_p)
    slab = slab.at[16 + Hp:16 + Hp + 1].set(b_fc_p)

    return {"w_hh": w_hh_p, "slab": slab,
            "hidden": H, "hidden_pad": Hp, "future": F, "fut_pad": Fp, "in_dim": D}


# --------------------------------------------------------------------------------------
# Forward
# --------------------------------------------------------------------------------------
@functools.partial(jax.jit, static_argnames=("hidden_pad", "fut_pad", "future"))
def _forward_impl(x, w_hh_packed, param_slab, *, hidden_pad, fut_pad, future):
    B, T, D = x.shape
    B_pad = max(8, ((B + 7) // 8) * 8)

    # Per-call activation prep only: time-major + batch padded to full 8-sublane tiles.
    x_tm = jnp.transpose(x, (1, 0, 2)).astype(jnp.float32)        # (T, B, D)
    x_tm = jnp.pad(x_tm, ((0, 0), (0, B_pad - B), (0, 0)))        # (T, B_pad, D)

    kernel = functools.partial(_lstm_last_fc_kernel,
                               hidden_pad=hidden_pad, fut_pad=fut_pad)
    vmem = pl.BlockSpec(memory_space=pltpu.MemorySpace.VMEM)

    out_padded = pl.pallas_call(
        kernel,
        out_shape=jax.ShapeDtypeStruct((B_pad, fut_pad), jnp.float32),
        in_specs=[vmem, vmem, vmem],
        out_specs=vmem,
        scratch_shapes=[pltpu.VMEM((T, B_pad, 4 * hidden_pad), jnp.float32)],
    )(x_tm, w_hh_packed, param_slab)
    return out_padded[:B, :future]


def simple_lstm_forward(x, params):
    """x: (B, T, D) f32; params from prepare_simple_lstm_params. Returns (B, F) f32."""
    return _forward_impl(x, params["w_hh"], params["slab"],
                         hidden_pad=params["hidden_pad"],
                         fut_pad=params["fut_pad"],
                         future=params["future"])


# --------------------------------------------------------------------------------------
# Pure-JAX reference (matches torch.nn.LSTM batch_first + Linear, f32 everywhere)
# --------------------------------------------------------------------------------------
def reference_forward(x, w_ih, w_hh, b_ih, b_hh, w_fc, b_fc):
    B, T, D = x.shape
    H = w_hh.shape[1]
    h = jnp.zeros((B, H), jnp.float32)
    c = jnp.zeros((B, H), jnp.float32)
    for t in range(T):
        gates = x[:, t, :] @ w_ih.T + h @ w_hh.T + b_ih + b_hh
        i = jax.nn.sigmoid(gates[:, 0 * H:1 * H])
        f = jax.nn.sigmoid(gates[:, 1 * H:2 * H])
        g = jnp.tanh(gates[:, 2 * H:3 * H])
        o = jax.nn.sigmoid(gates[:, 3 * H:4 * H])
        c = f * c + i * g
        h = o * jnp.tanh(c)
    return h @ w_fc.T + b_fc


if __name__ == "__main__":
    # Small shapes consistent with the module: input_dim=1, hidden=64.
    B, T, D, H, FUT = 2, 8, 1, 64, 4

    key = jax.random.PRNGKey(0)
    kx, k1, k2, k3, k4, k5, k6 = jax.random.split(key, 7)

    # PyTorch-style init: uniform(-1/sqrt(H), 1/sqrt(H)).
    bound = 1.0 / jnp.sqrt(jnp.float32(H))
    w_ih = jax.random.uniform(k1, (4 * H, D), jnp.float32, -bound, bound)
    w_hh = jax.random.uniform(k2, (4 * H, H), jnp.float32, -bound, bound)
    b_ih = jax.random.uniform(k3, (4 * H,), jnp.float32, -bound, bound)
    b_hh = jax.random.uniform(k4, (4 * H,), jnp.float32, -bound, bound)
    w_fc = jax.random.uniform(k5, (FUT, H), jnp.float32, -bound, bound)
    b_fc = jax.random.uniform(k6, (FUT,), jnp.float32, -bound, bound)

    x = jax.random.normal(kx, (B, T, D), jnp.float32)

    # One-time weight reformat (model-init time), then the cheap per-call forward.
    params = prepare_simple_lstm_params(w_ih, w_hh, b_ih, b_hh, w_fc, b_fc)

    out = simple_lstm_forward(x, params)
    out = jax.block_until_ready(out)

    ref = reference_forward(x, w_ih, w_hh, b_ih, b_hh, w_fc, b_fc)
    assert out.shape == (B, FUT), out.shape
    # Tolerance loosened slightly vs. pure-f32 because the recurrent matmul operands
    # are bf16 (f32 accumulation; f32 h/c carry and gating math).
    assert jnp.allclose(out, ref, atol=2e-2, rtol=2e-2), (out, ref)

    print("KERNEL_OK")
</pallas_src>

<mosaic_0001>
module attributes {stable_mosaic.version = 11 : i64} {
  func.func @_lstm_last_fc_kernel(%arg0: memref<8x8x1xf32, #tpu.memory_space<vmem>>, %arg1: memref<128x512xbf16, #tpu.memory_space<vmem>>, %arg2: memref<152x512xf32, #tpu.memory_space<vmem>>, %arg3: memref<8x128xf32, #tpu.memory_space<vmem>>, %arg4: memref<8x8x512xf32, #tpu.memory_space<vmem>>) attributes {dimension_semantics = [], scalar_prefetch = 0 : i64, scratch_operands = 1 : i64, tpu.core_type = #tpu.core_type<tc>} {
    %c0 = arith.constant 0 : index
    %c0_0 = arith.constant 0 : index
    %0 = vector.load %arg2[%c0, %c0_0] : memref<152x512xf32, #tpu.memory_space<vmem>>, vector<1x512xf32>
    %c8 = arith.constant 8 : index
    %c0_1 = arith.constant 0 : index
    %1 = vector.load %arg2[%c8, %c0_1] : memref<152x512xf32, #tpu.memory_space<vmem>>, vector<1x512xf32>
    %c16 = arith.constant 16 : index
    %c0_2 = arith.constant 0 : index
    %2 = vector.load %arg2[%c16, %c0_2] : memref<152x512xf32, #tpu.memory_space<vmem>>, vector<128x128xf32>
    %c144 = arith.constant 144 : index
    %c0_3 = arith.constant 0 : index
    %3 = vector.load %arg2[%c144, %c0_3] : memref<152x512xf32, #tpu.memory_space<vmem>>, vector<1x128xf32>
    %c0_4 = arith.constant 0 : index
    %c0_5 = arith.constant 0 : index
    %c0_6 = arith.constant 0 : index
    %4 = vector.load %arg0[%c0_4, %c0_5, %c0_6] : memref<8x8x1xf32, #tpu.memory_space<vmem>>, vector<8x8x1xf32>
    %5 = vector.shape_cast %0 : vector<1x512xf32> to vector<1x1x512xf32>
    %6 = vector.broadcast %4 : vector<8x8x1xf32> to vector<8x8x512xf32>
    %7 = vector.broadcast %5 : vector<1x1x512xf32> to vector<8x8x512xf32>
    %8 = arith.mulf %6, %7 : vector<8x8x512xf32>
    %9 = vector.shape_cast %1 : vector<1x512xf32> to vector<1x1x512xf32>
    %10 = vector.broadcast %9 : vector<1x1x512xf32> to vector<8x8x512xf32>
    %11 = arith.addf %8, %10 : vector<8x8x512xf32>
    %c0_7 = arith.constant 0 : index
    %c0_8 = arith.constant 0 : index
    %c0_9 = arith.constant 0 : index
    %12 = vector.load %arg4[%c0_7, %c0_8, %c0_9] : memref<8x8x512xf32, #tpu.memory_space<vmem>>, vector<8x8x512xf32>
    tpu.vector_store %arg4[%c0_7, %c0_8, %c0_9], %11 {strides = array<i32>} : memref<8x8x512xf32, #tpu.memory_space<vmem>>, vector<8x8x512xf32>,
    %c0_10 = arith.constant 0 : index
    %c0_11 = arith.constant 0 : index
    %13 = vector.load %arg1[%c0_10, %c0_11] : memref<128x512xbf16, #tpu.memory_space<vmem>>, vector<128x512xbf16>
    %cst = arith.constant 0.000000e+00 : f32
    %14 = vector.broadcast %cst : f32 to vector<8x128xf32>
    %cst_12 = arith.constant 0.000000e+00 : f32
    %15 = vector.broadcast %cst_12 : f32 to vector<8x128xf32>
    %c0_13 = arith.constant 0 : index
    %c0_14 = arith.constant 0 : index
    %c0_15 = arith.constant 0 : index
    %16 = vector.load %arg4[%c0_13, %c0_14, %c0_15] : memref<8x8x512xf32, #tpu.memory_space<vmem>>, vector<1x8x512xf32>
    %17 = vector.shape_cast %16 : vector<1x8x512xf32> to vector<8x512xf32>
    %18 = arith.truncf %14 : vector<8x128xf32> to vector<8x128xbf16>
    %cst_16 = arith.constant dense<0.000000e+00> : vector<8x512xf32>
    %19 = tpu.matmul %18, %13, %cst_16 {dimension_numbers = #tpu.dot_dimension_numbers<[1], [0], [0], [1], [0, 0, 1, 1], [], []>} : vector<8x128xbf16>, vector<128x512xbf16>, vector<8x512xf32> -> vector<8x512xf32>
    %20 = arith.addf %17, %19 : vector<8x512xf32>
    %21 = vector.extract_strided_slice %20 {offsets = [0, 0], sizes = [8, 384], strides = [1, 1]} : vector<8x512xf32> to vector<8x384xf32>
    %22 = arith.negf %21 : vector<8x384xf32>
    %23 = math.exp %22 : vector<8x384xf32>
    %cst_17 = arith.constant 1.000000e+00 : f32
    %24 = vector.broadcast %cst_17 : f32 to vector<8x384xf32>
    %25 = arith.addf %24, %23 : vector<8x384xf32>
    %26 = arith.divf %24, %25 : vector<8x384xf32>
    %27 = vector.extract_strided_slice %20 {offsets = [0, 384], sizes = [8, 128], strides = [1, 1]} : vector<8x512xf32> to vector<8x128xf32>
    %28 = math.tanh %27 : vector<8x128xf32>
    %29 = vector.extract_strided_slice %26 {offsets = [0, 0], sizes = [8, 128], strides = [1, 1]} : vector<8x384xf32> to vector<8x128xf32>
    %30 = vector.extract_strided_slice %26 {offsets = [0, 128], sizes = [8, 128], strides = [1, 1]} : vector<8x384xf32> to vector<8x128xf32>
    %31 = vector.extract_strided_slice %26 {offsets = [0, 256], sizes = [8, 128], strides = [1, 1]} : vector<8x384xf32> to vector<8x128xf32>
    %32 = arith.mulf %30, %15 : vector<8x128xf32>
    %33 = arith.mulf %29, %28 : vector<8x128xf32>
    %34 = arith.addf %32, %33 : vector<8x128xf32>
    %35 = math.tanh %34 : vector<8x128xf32>
    %36 = arith.mulf %31, %35 : vector<8x128xf32>
    %c1 = arith.constant 1 : index
    %c0_18 = arith.constant 0 : index
    %c0_19 = arith.constant 0 : index
    %37 = vector.load %arg4[%c1, %c0_18, %c0_19] : memref<8x8x512xf32, #tpu.memory_space<vmem>>, vector<1x8x512xf32>
    %38 = vector.shape_cast %37 : vector<1x8x512xf32> to vector<8x512xf32>
    %39 = arith.truncf %36 : vector<8x128xf32> to vector<8x128xbf16>
    %cst_20 = arith.constant dense<0.000000e+00> : vector<8x512xf32>
    %40 = tpu.matmul %39, %13, %cst_20 {dimension_numbers = #tpu.dot_dimension_numbers<[1], [0], [0], [1], [0, 0, 1, 1], [], []>} : vector<8x128xbf16>, vector<128x512xbf16>, vector<8x512xf32> -> vector<8x512xf32>
    %41 = arith.addf %38, %40 : vector<8x512xf32>
    %42 = vector.extract_strided_slice %41 {offsets = [0, 0], sizes = [8, 384], strides = [1, 1]} : vector<8x512xf32> to vector<8x384xf32>
    %43 = arith.negf %42 : vector<8x384xf32>
    %44 = math.exp %43 : vector<8x384xf32>
    %cst_21 = arith.constant 1.000000e+00 : f32
    %45 = vector.broadcast %cst_21 : f32 to vector<8x384xf32>
    %46 = arith.addf %45, %44 : vector<8x384xf32>
    %47 = arith.divf %45, %46 : vector<8x384xf32>
    %48 = vector.extract_strided_slice %41 {offsets = [0, 384], sizes = [8, 128], strides = [1, 1]} : vector<8x512xf32> to vector<8x128xf32>
    %49 = math.tanh %48 : vector<8x128xf32>
    %50 = vector.extract_strided_slice %47 {offsets = [0, 0], sizes = [8, 128], strides = [1, 1]} : vector<8x384xf32> to vector<8x128xf32>
    %51 = vector.extract_strided_slice %47 {offsets = [0, 128], sizes = [8, 128], strides = [1, 1]} : vector<8x384xf32> to vector<8x128xf32>
    %52 = vector.extract_strided_slice %47 {offsets = [0, 256], sizes = [8, 128], strides = [1, 1]} : vector<8x384xf32> to vector<8x128xf32>
    %53 = arith.mulf %51, %34 : vector<8x128xf32>
    %54 = arith.mulf %50, %49 : vector<8x128xf32>
    %55 = arith.addf %53, %54 : vector<8x128xf32>
    %56 = math.tanh %55 : vector<8x128xf32>
    %57 = arith.mulf %52, %56 : vector<8x128xf32>
    %c2 = arith.constant 2 : index
    %c0_22 = arith.constant 0 : index
    %c0_23 = arith.constant 0 : index
    %58 = vector.load %arg4[%c2, %c0_22, %c0_23] : memref<8x8x512xf32, #tpu.memory_space<vmem>>, vector<1x8x512xf32>
    %59 = vector.shape_cast %58 : vector<1x8x512xf32> to vector<8x512xf32>
    %60 = arith.truncf %57 : vector<8x128xf32> to vector<8x128xbf16>
    %cst_24 = arith.constant dense<0.000000e+00> : vector<8x512xf32>
    %61 = tpu.matmul %60, %13, %cst_24 {dimension_numbers = #tpu.dot_dimension_numbers<[1], [0], [0], [1], [0, 0, 1, 1], [], []>} : vector<8x128xbf16>, vector<128x512xbf16>, vector<8x512xf32> -> vector<8x512xf32>
    %62 = arith.addf %59, %61 : vector<8x512xf32>
    %63 = vector.extract_strided_slice %62 {offsets = [0, 0], sizes = [8, 384], strides = [1, 1]} : vector<8x512xf32> to vector<8x384xf32>
    %64 = arith.negf %63 : vector<8x384xf32>
    %65 = math.exp %64 : vector<8x384xf32>
    %cst_25 = arith.constant 1.000000e+00 : f32
    %66 = vector.broadcast %cst_25 : f32 to vector<8x384xf32>
    %67 = arith.addf %66, %65 : vector<8x384xf32>
    %68 = arith.divf %66, %67 : vector<8x384xf32>
    %69 = vector.extract_strided_slice %62 {offsets = [0, 384], sizes = [8, 128], strides = [1, 1]} : vector<8x512xf32> to vector<8x128xf32>
    %70 = math.tanh %69 : vector<8x128xf32>
    %71 = vector.extract_strided_slice %68 {offsets = [0, 0], sizes = [8, 128], strides = [1, 1]} : vector<8x384xf32> to vector<8x128xf32>
    %72 = vector.extract_strided_slice %68 {offsets = [0, 128], sizes = [8, 128], strides = [1, 1]} : vector<8x384xf32> to vector<8x128xf32>
    %73 = vector.extract_strided_slice %68 {offsets = [0, 256], sizes = [8, 128], strides = [1, 1]} : vector<8x384xf32> to vector<8x128xf32>
    %74 = arith.mulf %72, %55 : vector<8x128xf32>
    %75 = arith.mulf %71, %70 : vector<8x128xf32>
    %76 = arith.addf %74, %75 : vector<8x128xf32>
    %77 = math.tanh %76 : vector<8x128xf32>
    %78 = arith.mulf %73, %77 : vector<8x128xf32>
    %c3 = arith.constant 3 : index
    %c0_26 = arith.constant 0 : index
    %c0_27 = arith.constant 0 : index
    %79 = vector.load %arg4[%c3, %c0_26, %c0_27] : memref<8x8x512xf32, #tpu.memory_space<vmem>>, vector<1x8x512xf32>
    %80 = vector.shape_cast %79 : vector<1x8x512xf32> to vector<8x512xf32>
    %81 = arith.truncf %78 : vector<8x128xf32> to vector<8x128xbf16>
    %cst_28 = arith.constant dense<0.000000e+00> : vector<8x512xf32>
    %82 = tpu.matmul %81, %13, %cst_28 {dimension_numbers = #tpu.dot_dimension_numbers<[1], [0], [0], [1], [0, 0, 1, 1], [], []>} : vector<8x128xbf16>, vector<128x512xbf16>, vector<8x512xf32> -> vector<8x512xf32>
    %83 = arith.addf %80, %82 : vector<8x512xf32>
    %84 = vector.extract_strided_slice %83 {offsets = [0, 0], sizes = [8, 384], strides = [1, 1]} : vector<8x512xf32> to vector<8x384xf32>
    %85 = arith.negf %84 : vector<8x384xf32>
    %86 = math.exp %85 : vector<8x384xf32>
    %cst_29 = arith.constant 1.000000e+00 : f32
    %87 = vector.broadcast %cst_29 : f32 to vector<8x384xf32>
    %88 = arith.addf %87, %86 : vector<8x384xf32>
    %89 = arith.divf %87, %88 : vector<8x384xf32>
    %90 = vector.extract_strided_slice %83 {offsets = [0, 384], sizes = [8, 128], strides = [1, 1]} : vector<8x512xf32> to vector<8x128xf32>
    %91 = math.tanh %90 : vector<8x128xf32>
    %92 = vector.extract_strided_slice %89 {offsets = [0, 0], sizes = [8, 128], strides = [1, 1]} : vector<8x384xf32> to vector<8x128xf32>
    %93 = vector.extract_strided_slice %89 {offsets = [0, 128], sizes = [8, 128], strides = [1, 1]} : vector<8x384xf32> to vector<8x128xf32>
    %94 = vector.extract_strided_slice %89 {offsets = [0, 256], sizes = [8, 128], strides = [1, 1]} : vector<8x384xf32> to vector<8x128xf32>
    %95 = arith.mulf %93, %76 : vector<8x128xf32>
    %96 = arith.mulf %92, %91 : vector<8x128xf32>
    %97 = arith.addf %95, %96 : vector<8x128xf32>
    %98 = math.tanh %97 : vector<8x128xf32>
    %99 = arith.mulf %94, %98 : vector<8x128xf32>
    %c4 = arith.constant 4 : index
    %c0_30 = arith.constant 0 : index
    %c0_31 = arith.constant 0 : index
    %100 = vector.load %arg4[%c4, %c0_30, %c0_31] : memref<8x8x512xf32, #tpu.memory_space<vmem>>, vector<1x8x512xf32>
    %101 = vector.shape_cast %100 : vector<1x8x512xf32> to vector<8x512xf32>
    %102 = arith.truncf %99 : vector<8x128xf32> to vector<8x128xbf16>
    %cst_32 = arith.constant dense<0.000000e+00> : vector<8x512xf32>
    %103 = tpu.matmul %102, %13, %cst_32 {dimension_numbers = #tpu.dot_dimension_numbers<[1], [0], [0], [1], [0, 0, 1, 1], [], []>} : vector<8x128xbf16>, vector<128x512xbf16>, vector<8x512xf32> -> vector<8x512xf32>
    %104 = arith.addf %101, %103 : vector<8x512xf32>
    %105 = vector.extract_strided_slice %104 {offsets = [0, 0], sizes = [8, 384], strides = [1, 1]} : vector<8x512xf32> to vector<8x384xf32>
    %106 = arith.negf %105 : vector<8x384xf32>
    %107 = math.exp %106 : vector<8x384xf32>
    %cst_33 = arith.constant 1.000000e+00 : f32
    %108 = vector.broadcast %cst_33 : f32 to vector<8x384xf32>
    %109 = arith.addf %108, %107 : vector<8x384xf32>
    %110 = arith.divf %108, %109 : vector<8x384xf32>
    %111 = vector.extract_strided_slice %104 {offsets = [0, 384], sizes = [8, 128], strides = [1, 1]} : vector<8x512xf32> to vector<8x128xf32>
    %112 = math.tanh %111 : vector<8x128xf32>
    %113 = vector.extract_strided_slice %110 {offsets = [0, 0], sizes = [8, 128], strides = [1, 1]} : vector<8x384xf32> to vector<8x128xf32>
    %114 = vector.extract_strided_slice %110 {offsets = [0, 128], sizes = [8, 128], strides = [1, 1]} : vector<8x384xf32> to vector<8x128xf32>
    %115 = vector.extract_strided_slice %110 {offsets = [0, 256], sizes = [8, 128], strides = [1, 1]} : vector<8x384xf32> to vector<8x128xf32>
    %116 = arith.mulf %114, %97 : vector<8x128xf32>
    %117 = arith.mulf %113, %112 : vector<8x128xf32>
    %118 = arith.addf %116, %117 : vector<8x128xf32>
    %119 = math.tanh %118 : vector<8x128xf32>
    %120 = arith.mulf %115, %119 : vector<8x128xf32>
    %c5 = arith.constant 5 : index
    %c0_34 = arith.constant 0 : index
    %c0_35 = arith.constant 0 : index
    %121 = vector.load %arg4[%c5, %c0_34, %c0_35] : memref<8x8x512xf32, #tpu.memory_space<vmem>>, vector<1x8x512xf32>
    %122 = vector.shape_cast %121 : vector<1x8x512xf32> to vector<8x512xf32>
    %123 = arith.truncf %120 : vector<8x128xf32> to vector<8x128xbf16>
    %cst_36 = arith.constant dense<0.000000e+00> : vector<8x512xf32>
    %124 = tpu.matmul %123, %13, %cst_36 {dimension_numbers = #tpu.dot_dimension_numbers<[1], [0], [0], [1], [0, 0, 1, 1], [], []>} : vector<8x128xbf16>, vector<128x512xbf16>, vector<8x512xf32> -> vector<8x512xf32>
    %125 = arith.addf %122, %124 : vector<8x512xf32>
    %126 = vector.extract_strided_slice %125 {offsets = [0, 0], sizes = [8, 384], strides = [1, 1]} : vector<8x512xf32> to vector<8x384xf32>
    %127 = arith.negf %126 : vector<8x384xf32>
    %128 = math.exp %127 : vector<8x384xf32>
    %cst_37 = arith.constant 1.000000e+00 : f32
    %129 = vector.broadcast %cst_37 : f32 to vector<8x384xf32>
    %130 = arith.addf %129, %128 : vector<8x384xf32>
    %131 = arith.divf %129, %130 : vector<8x384xf32>
    %132 = vector.extract_strided_slice %125 {offsets = [0, 384], sizes = [8, 128], strides = [1, 1]} : vector<8x512xf32> to vector<8x128xf32>
    %133 = math.tanh %132 : vector<8x128xf32>
    %134 = vector.extract_strided_slice %131 {offsets = [0, 0], sizes = [8, 128], strides = [1, 1]} : vector<8x384xf32> to vector<8x128xf32>
    %135 = vector.extract_strided_slice %131 {offsets = [0, 128], sizes = [8, 128], strides = [1, 1]} : vector<8x384xf32> to vector<8x128xf32>
    %136 = vector.extract_strided_slice %131 {offsets = [0, 256], sizes = [8, 128], strides = [1, 1]} : vector<8x384xf32> to vector<8x128xf32>
    %137 = arith.mulf %135, %118 : vector<8x128xf32>
    %138 = arith.mulf %134, %133 : vector<8x128xf32>
    %139 = arith.addf %137, %138 : vector<8x128xf32>
    %140 = math.tanh %139 : vector<8x128xf32>
    %141 = arith.mulf %136, %140 : vector<8x128xf32>
    %c6 = arith.constant 6 : index
    %c0_38 = arith.constant 0 : index
    %c0_39 = arith.constant 0 : index
    %142 = vector.load %arg4[%c6, %c0_38, %c0_39] : memref<8x8x512xf32, #tpu.memory_space<vmem>>, vector<1x8x512xf32>
    %143 = vector.shape_cast %142 : vector<1x8x512xf32> to vector<8x512xf32>
    %144 = arith.truncf %141 : vector<8x128xf32> to vector<8x128xbf16>
    %cst_40 = arith.constant dense<0.000000e+00> : vector<8x512xf32>
    %145 = tpu.matmul %144, %13, %cst_40 {dimension_numbers = #tpu.dot_dimension_numbers<[1], [0], [0], [1], [0, 0, 1, 1], [], []>} : vector<8x128xbf16>, vector<128x512xbf16>, vector<8x512xf32> -> vector<8x512xf32>
    %146 = arith.addf %143, %145 : vector<8x512xf32>
    %147 = vector.extract_strided_slice %146 {offsets = [0, 0], sizes = [8, 384], strides = [1, 1]} : vector<8x512xf32> to vector<8x384xf32>
    %148 = arith.negf %147 : vector<8x384xf32>
    %149 = math.exp %148 : vector<8x384xf32>
    %cst_41 = arith.constant 1.000000e+00 : f32
    %150 = vector.broadcast %cst_41 : f32 to vector<8x384xf32>
    %151 = arith.addf %150, %149 : vector<8x384xf32>
    %152 = arith.divf %150, %151 : vector<8x384xf32>
    %153 = vector.extract_strided_slice %146 {offsets = [0, 384], sizes = [8, 128], strides = [1, 1]} : vector<8x512xf32> to vector<8x128xf32>
    %154 = math.tanh %153 : vector<8x128xf32>
    %155 = vector.extract_strided_slice %152 {offsets = [0, 0], sizes = [8, 128], strides = [1, 1]} : vector<8x384xf32> to vector<8x128xf32>
    %156 = vector.extract_strided_slice %152 {offsets = [0, 128], sizes = [8, 128], strides = [1, 1]} : vector<8x384xf32> to vector<8x128xf32>
    %157 = vector.extract_strided_slice %152 {offsets = [0, 256], sizes = [8, 128], strides = [1, 1]} : vector<8x384xf32> to vector<8x128xf32>
    %158 = arith.mulf %156, %139 : vector<8x128xf32>
    %159 = arith.mulf %155, %154 : vector<8x128xf32>
    %160 = arith.addf %158, %159 : vector<8x128xf32>
    %161 = math.tanh %160 : vector<8x128xf32>
    %162 = arith.mulf %157, %161 : vector<8x128xf32>
    %c7 = arith.constant 7 : index
    %c0_42 = arith.constant 0 : index
    %c0_43 = arith.constant 0 : index
    %163 = vector.load %arg4[%c7, %c0_42, %c0_43] : memref<8x8x512xf32, #tpu.memory_space<vmem>>, vector<1x8x512xf32>
    %164 = vector.shape_cast %163 : vector<1x8x512xf32> to vector<8x512xf32>
    %165 = arith.truncf %162 : vector<8x128xf32> to vector<8x128xbf16>
    %cst_44 = arith.constant dense<0.000000e+00> : vector<8x512xf32>
    %166 = tpu.matmul %165, %13, %cst_44 {dimension_numbers = #tpu.dot_dimension_numbers<[1], [0], [0], [1], [0, 0, 1, 1], [], []>} : vector<8x128xbf16>, vector<128x512xbf16>, vector<8x512xf32> -> vector<8x512xf32>
    %167 = arith.addf %164, %166 : vector<8x512xf32>
    %168 = vector.extract_strided_slice %167 {offsets = [0, 0], sizes = [8, 384], strides = [1, 1]} : vector<8x512xf32> to vector<8x384xf32>
    %169 = arith.negf %168 : vector<8x384xf32>
    %170 = math.exp %169 : vector<8x384xf32>
    %cst_45 = arith.constant 1.000000e+00 : f32
    %171 = vector.broadcast %cst_45 : f32 to vector<8x384xf32>
    %172 = arith.addf %171, %170 : vector<8x384xf32>
    %173 = arith.divf %171, %172 : vector<8x384xf32>
    %174 = vector.extract_strided_slice %167 {offsets = [0, 384], sizes = [8, 128], strides = [1, 1]} : vector<8x512xf32> to vector<8x128xf32>
    %175 = math.tanh %174 : vector<8x128xf32>
    %176 = vector.extract_strided_slice %173 {offsets = [0, 0], sizes = [8, 128], strides = [1, 1]} : vector<8x384xf32> to vector<8x128xf32>
    %177 = vector.extract_strided_slice %173 {offsets = [0, 128], sizes = [8, 128], strides = [1, 1]} : vector<8x384xf32> to vector<8x128xf32>
    %178 = vector.extract_strided_slice %173 {offsets = [0, 256], sizes = [8, 128], strides = [1, 1]} : vector<8x384xf32> to vector<8x128xf32>
    %179 = arith.mulf %177, %160 : vector<8x128xf32>
    %180 = arith.mulf %176, %175 : vector<8x128xf32>
    %181 = arith.addf %179, %180 : vector<8x128xf32>
    %182 = math.tanh %181 : vector<8x128xf32>
    %183 = arith.mulf %178, %182 : vector<8x128xf32>
    %cst_46 = arith.constant dense<0.000000e+00> : vector<8x128xf32>
    %184 = tpu.matmul %183, %2, %cst_46 {dimension_numbers = #tpu.dot_dimension_numbers<[1], [0], [0], [1], [0, 0, 1, 1], [], []>} : vector<8x128xf32>, vector<128x128xf32>, vector<8x128xf32> -> vector<8x128xf32>
    %185 = vector.broadcast %3 : vector<1x128xf32> to vector<8x128xf32>
    %186 = arith.addf %184, %185 : vector<8x128xf32>
    %c0_47 = arith.constant 0 : index
    %c0_48 = arith.constant 0 : index
    %187 = vector.load %arg3[%c0_47, %c0_48] : memref<8x128xf32, #tpu.memory_space<vmem>>, vector<8x128xf32>
    tpu.vector_store %arg3[%c0_47, %c0_48], %186 {strides = array<i32>} : memref<8x128xf32, #tpu.memory_space<vmem>>, vector<8x128xf32>,
    return
  }
}

</mosaic_0001>

<llo_original>
// kernel: _forward_impl.1
$region0: #{_forward_impl.1}
  #allocation0 [shape = 'u32[]', space=smem, size = 0x4, offset = 0x4, fixed_abs, tag = 'smem constant byte address 0x4 - core index']
  #allocation1 [shape = 'u32[144,128]{1,0:T(1,128)}', space=vmem, size = 0x12000, scoped, tag = 'internal scratch']
  #allocation2 [shape = 'f32[8,8,512]{2,1,0:T(8,128)}', space=vmem, size = 0x20000, scoped, tag = 'scratch operand']
  %s0 = inlined_call_operand.vmem [shape: f32[8,8,1], index: 0, kind: input, shape index: {}]
  %s1 = inlined_call_operand.hbm [shape: bf16[128,512], index: 1, kind: input, shape index: {}]
  %s2 = inlined_call_operand.hbm [shape: f32[152,512], index: 2, kind: input, shape index: {}]
  %s3 = inlined_call_operand.vmem [shape: f32[8,128], index: 3, kind: output, shape index: {}]
  %s4 = sld [smem:[#allocation0]]
  $region30: #{_forward_impl.1} parent=0
    _
  %s6 = ssub.s32 1, %s4
  %s7 = scalar_select 0, %s6, %s4
  $region1: #{_forward_impl.1} parent=0
    #allocation3 [shape = 'u8[131072]{0}', space=vmem, size = 0x20000, scoped, tag = 'input window, operand 1, single buffered']
    #allocation4 [shape = 's32[1]{0}', space=sflag, size = 0x4, scoped, tag = 'scoped memory for _forward_impl.1']
    #allocation5 [shape = 'u8[311296]{0}', space=vmem, size = 0x4c000, scoped, tag = 'input window, operand 2, single buffered']
    #allocation6 [shape = 's32[1]{0}', space=sflag, size = 0x4, scoped, tag = 'scoped memory for _forward_impl.1']
    %8 = vsyncpa [#allocation4], 0
    %9 = vsyncpa [#allocation6], 0
    // Predicated region
    $region2: #{_forward_impl.1} parent=1 // pred_check
      _
    $region3: #{_forward_impl.1} parent=1 // pred_check_branch
      %11 = sbr.rel (0) target = $region5
    $region4: #{_forward_impl.1} parent=1 // pred_region
      _
    $region5: #{_forward_impl.1} parent=1 // pred_fallthru
      _
    // Predicated region
    $region6: #{_forward_impl.1} parent=1 // pred_check
      _
    $region7: #{_forward_impl.1} parent=1 // pred_check_branch
      %13 = sbr.rel (0) target = $region9
    $region8: #{_forward_impl.1} parent=1 // pred_region
      %s15 = ssub.s32 4096, 4096
      %16 = vsyncadd [#allocation4], %s15
      %s17 = sshll.u32 [#allocation3], 4
      %s18 = int_to_ptr.vmem [resolvable:$true] %s17
      %23 = dma.hbm_to_vmem [thread:$0]  %s1, 4096, %s18, [#allocation4], 256, 256, 16
    $region9: #{_forward_impl.1} parent=1 // pred_fallthru
      _
    // Predicated region
    $region10: #{_forward_impl.1} parent=1 // pred_check
      _
    $region11: #{_forward_impl.1} parent=1 // pred_check_branch
      %25 = sbr.rel (0) target = $region13
    $region12: #{_forward_impl.1} parent=1 // pred_region
      %s27 = ssub.s32 9728, 9728
      %28 = vsyncadd [#allocation6], %s27
      %s29 = sshll.u32 [#allocation5], 4
      %s30 = int_to_ptr.vmem [resolvable:$true] %s29
      %35 = dma.hbm_to_vmem [thread:$0]  %s2, 9728, %s30, [#allocation6], 512, 512, 32
    $region13: #{_forward_impl.1} parent=1 // pred_fallthru
      _
    // Predicated region
    $region14: #{_forward_impl.1} parent=1 // pred_check
      _
    $region15: #{_forward_impl.1} parent=1 // pred_check_branch
      %37 = sbr.rel (0) target = $region17
    $region16: #{_forward_impl.1} parent=1 // pred_region
      %38 = dma.done [#allocation4], 4096
    $region17: #{_forward_impl.1} parent=1 // pred_fallthru
      _
    // Predicated region
    $region18: #{_forward_impl.1} parent=1 // pred_check
      _
    $region19: #{_forward_impl.1} parent=1 // pred_check_branch
      %40 = sbr.rel (0) target = $region21
    $region20: #{_forward_impl.1} parent=1 // pred_region
      %41 = dma.done [#allocation6], 9728
    $region21: #{_forward_impl.1} parent=1 // pred_fallthru
      _
    %v43 = vld [vmem:[#allocation5] ss:$8 sm:$0xf]
    %s44 = scalar_lea.vmem [#allocation5], 32
    %v45 = vld [vmem:[%s44] ss:$8 sm:$0xf]
    %v46 = vld [vmem:[#allocation5 + $0x40] sm:$0xff]
    %v47 = vld [vmem:[#allocation5 + $0x60] sm:$0xff]
    %v48 = vld [vmem:[#allocation5 + $0x80] sm:$0xff]
    %v49 = vld [vmem:[#allocation5 + $0xa0] sm:$0xff]
    %v50 = vld [vmem:[#allocation5 + $0xc0] sm:$0xff]
    %v51 = vld [vmem:[#allocation5 + $0xe0] sm:$0xff]
    %v52 = vld [vmem:[#allocation5 + $0x100] sm:$0xff]
    %v53 = vld [vmem:[#allocation5 + $0x120] sm:$0xff]
    %v54 = vld [vmem:[#allocation5 + $0x140] sm:$0xff]
    %v55 = vld [vmem:[#allocation5 + $0x160] sm:$0xff]
    %v56 = vld [vmem:[#allocation5 + $0x180] sm:$0xff]
    %v57 = vld [vmem:[#allocation5 + $0x1a0] sm:$0xff]
    %v58 = vld [vmem:[#allocation5 + $0x1c0] sm:$0xff]
    %v59 = vld [vmem:[#allocation5 + $0x1e0] sm:$0xff]
    %v60 = vld [vmem:[#allocation5 + $0x200] sm:$0xff]
    %v61 = vld [vmem:[#allocation5 + $0x220] sm:$0xff]
    %v62 = vld [vmem:[#allocation5 + $0x240] ss:$0 sm:$0xff]
    %v63 = vld [vmem:[%s0] sm:$0xff]
    %v64 = vld [vmem:[%s0 + $0x8] sm:$0xff]
    %v65 = vld [vmem:[%s0 + $0x10] sm:$0xff]
    %v66 = vld [vmem:[%s0 + $0x18] sm:$0xff]
    %v67 = vld [vmem:[%s0 + $0x20] sm:$0xff]
    %v68 = vld [vmem:[%s0 + $0x28] sm:$0xff]
    %v69 = vld [vmem:[%s0 + $0x30] sm:$0xff]
    %v70 = vld [vmem:[%s0 + $0x38] sm:$0xff]
    %72 = vset.pattern.permute.xlu0 0
    %73 = vperm.xlu0 %72, %v63
    %v74 = vpop.permute.xlu0 %73
    %77 = vset.pattern.permute.xlu0 0
    %78 = vperm.xlu0 %77, %v64
    %v79 = vpop.permute.xlu0 %78
    %82 = vset.pattern.permute.xlu0 0
    %83 = vperm.xlu0 %82, %v65
    %v84 = vpop.permute.xlu0 %83
    %87 = vset.pattern.permute.xlu0 0
    %88 = vperm.xlu0 %87, %v66
    %v89 = vpop.permute.xlu0 %88
    %92 = vset.pattern.permute.xlu0 0
    %93 = vperm.xlu0 %92, %v67
    %v94 = vpop.permute.xlu0 %93
    %97 = vset.pattern.permute.xlu0 0
    %98 = vperm.xlu0 %97, %v68
    %v99 = vpop.permute.xlu0 %98
    %102 = vset.pattern.permute.xlu0 0
    %103 = vperm.xlu0 %102, %v69
    %v104 = vpop.permute.xlu0 %103
    %107 = vset.pattern.permute.xlu0 0
    %108 = vperm.xlu0 %107, %v70
    %v109 = vpop.permute.xlu0 %108
    %v112 = vlaneseq
    %v113 = vshrl.u32 %v112, 7
    %v114 = vsub.s32 0, %v113
    %v115 = vrot.slane %v43, %v114
    %v116 = vlaneseq
    %v117 = vshrl.u32 %v116, 7
    %v118 = vsub.s32 1, %v117
    %v119 = vrot.slane %v43, %v118
    %v120 = vlaneseq
    %v121 = vshrl.u32 %v120, 7
    %v122 = vsub.s32 2, %v121
    %v123 = vrot.slane %v43, %v122
    %v124 = vlaneseq
    %v125 = vshrl.u32 %v124, 7
    %v126 = vsub.s32 3, %v125
    %v127 = vrot.slane %v43, %v126
    %v132 = vmul.f32 %v74, %v115
    %v133 = vmul.f32 %v74, %v119
    %v134 = vmul.f32 %v74, %v123
    %v135 = vmul.f32 %v74, %v127
    %v136 = vmul.f32 %v79, %v115
    %v137 = vmul.f32 %v79, %v119
    %v138 = vmul.f32 %v79, %v123
    %v139 = vmul.f32 %v79, %v127
    %v140 = vmul.f32 %v84, %v115
    %v141 = vmul.f32 %v84, %v119
    %v142 = vmul.f32 %v84, %v123
    %v143 = vmul.f32 %v84, %v127
    %v144 = vmul.f32 %v89, %v115
    %v145 = vmul.f32 %v89, %v119
    %v146 = vmul.f32 %v89, %v123
    %v147 = vmul.f32 %v89, %v127
    %v148 = vmul.f32 %v94, %v115
    %v149 = vmul.f32 %v94, %v119
    %v150 = vmul.f32 %v94, %v123
    %v151 = vmul.f32 %v94, %v127
    %v152 = vmul.f32 %v99, %v115
    %v153 = vmul.f32 %v99, %v119
    %v154 = vmul.f32 %v99, %v123
    %v155 = vmul.f32 %v99, %v127
    %v156 = vmul.f32 %v104, %v115
    %v157 = vmul.f32 %v104, %v119
    %v158 = vmul.f32 %v104, %v123
    %v159 = vmul.f32 %v104, %v127
    %v160 = vmul.f32 %v109, %v115
    %v161 = vmul.f32 %v109, %v119
    %v162 = vmul.f32 %v109, %v123
    %v163 = vmul.f32 %v109, %v127
    %v165 = vlaneseq
    %v166 = vshrl.u32 %v165, 7
    %v167 = vsub.s32 0, %v166
    %v168 = vrot.slane %v45, %v167
    %v169 = vlaneseq
    %v170 = vshrl.u32 %v169, 7
    %v171 = vsub.s32 1, %v170
    %v172 = vrot.slane %v45, %v171
    %v173 = vlaneseq
    %v174 = vshrl.u32 %v173, 7
    %v175 = vsub.s32 2, %v174
    %v176 = vrot.slane %v45, %v175
    %v177 = vlaneseq
    %v178 = vshrl.u32 %v177, 7
    %v179 = vsub.s32 3, %v178
    %v180 = vrot.slane %v45, %v179
    %v185 = vadd.f32 %v132, %v168
    %v186 = vadd.f32 %v133, %v172
    %v187 = vadd.f32 %v134, %v176
    %v188 = vadd.f32 %v135, %v180
    %v189 = vadd.f32 %v136, %v168
    %v190 = vadd.f32 %v137, %v172
    %v191 = vadd.f32 %v138, %v176
    %v192 = vadd.f32 %v139, %v180
    %v193 = vadd.f32 %v140, %v168
    %v194 = vadd.f32 %v141, %v172
    %v195 = vadd.f32 %v142, %v176
    %v196 = vadd.f32 %v143, %v180
    %v197 = vadd.f32 %v144, %v168
    %v198 = vadd.f32 %v145, %v172
    %v199 = vadd.f32 %v146, %v176
    %v200 = vadd.f32 %v147, %v180
    %v201 = vadd.f32 %v148, %v168
    %v202 = vadd.f32 %v149, %v172
    %v203 = vadd.f32 %v150, %v176
    %v204 = vadd.f32 %v151, %v180
    %v205 = vadd.f32 %v152, %v168
    %v206 = vadd.f32 %v153, %v172
    %v207 = vadd.f32 %v154, %v176
    %v208 = vadd.f32 %v155, %v180
    %v209 = vadd.f32 %v156, %v168
    %v210 = vadd.f32 %v157, %v172
    %v211 = vadd.f32 %v158, %v176
    %v212 = vadd.f32 %v159, %v180
    %v213 = vadd.f32 %v160, %v168
    %v214 = vadd.f32 %v161, %v172
    %v215 = vadd.f32 %v162, %v176
    %v216 = vadd.f32 %v163, %v180
    %217 = vst [vmem:[#allocation2] sm:$0xff] %v185
    %218 = vst [vmem:[#allocation2 + $0x8] sm:$0xff] %v186
    %219 = vst [vmem:[#allocation2 + $0x10] sm:$0xff] %v187
    %220 = vst [vmem:[#allocation2 + $0x18] sm:$0xff] %v188
    %221 = vst [vmem:[#allocation2 + $0x20] sm:$0xff] %v189
    %222 = vst [vmem:[#allocation2 + $0x28] sm:$0xff] %v190
    %223 = vst [vmem:[#allocation2 + $0x30] sm:$0xff] %v191
    %224 = vst [vmem:[#allocation2 + $0x38] sm:$0xff] %v192
    %225 = vst [vmem:[#allocation2 + $0x40] sm:$0xff] %v193
    %226 = vst [vmem:[#allocation2 + $0x48] sm:$0xff] %v194
    %227 = vst [vmem:[#allocation2 + $0x50] sm:$0xff] %v195
    %228 = vst [vmem:[#allocation2 + $0x58] sm:$0xff] %v196
    %229 = vst [vmem:[#allocation2 + $0x60] sm:$0xff] %v197
    %230 = vst [vmem:[#allocation2 + $0x68] sm:$0xff] %v198
    %231 = vst [vmem:[#allocation2 + $0x70] sm:$0xff] %v199
    %232 = vst [vmem:[#allocation2 + $0x78] sm:$0xff] %v200
    %233 = vst [vmem:[#allocation2 + $0x80] sm:$0xff] %v201
    %234 = vst [vmem:[#allocation2 + $0x88] sm:$0xff] %v202
    %235 = vst [vmem:[#allocation2 + $0x90] sm:$0xff] %v203
    %236 = vst [vmem:[#allocation2 + $0x98] sm:$0xff] %v204
    %237 = vst [vmem:[#allocation2 + $0xa0] sm:$0xff] %v205
    %238 = vst [vmem:[#allocation2 + $0xa8] sm:$0xff] %v206
    %239 = vst [vmem:[#allocation2 + $0xb0] sm:$0xff] %v207
    %240 = vst [vmem:[#allocation2 + $0xb8] sm:$0xff] %v208
    %241 = vst [vmem:[#allocation2 + $0xc0] sm:$0xff] %v209
    %242 = vst [vmem:[#allocation2 + $0xc8] sm:$0xff] %v210
    %243 = vst [vmem:[#allocation2 + $0xd0] sm:$0xff] %v211
    %244 = vst [vmem:[#allocation2 + $0xd8] sm:$0xff] %v212
    %245 = vst [vmem:[#allocation2 + $0xe0] sm:$0xff] %v213
    %246 = vst [vmem:[#allocation2 + $0xe8] sm:$0xff] %v214
    %247 = vst [vmem:[#allocation2 + $0xf0] sm:$0xff] %v215
    %248 = vst [vmem:[#allocation2 + $0xf8] sm:$0xff] %v216
    %v249 = vld [vmem:[#allocation3] sm:$0xff]
    %v250 = vld [vmem:[#allocation3 + $0x8] sm:$0xff]
    %v251 = vld [vmem:[#allocation3 + $0x10] sm:$0xff]
    %v252 = vld [vmem:[#allocation3 + $0x18] sm:$0xff]
    %v253 = vld [vmem:[#allocation3 + $0x20] sm:$0xff]
    %v254 = vld [vmem:[#allocation3 + $0x28] sm:$0xff]
    %v255 = vld [vmem:[#allocation3 + $0x30] sm:$0xff]
    %v256 = vld [vmem:[#allocation3 + $0x38] sm:$0xff]
    %v257 = vld [vmem:[#allocation3 + $0x40] sm:$0xff]
    %v258 = vld [vmem:[#allocation3 + $0x48] sm:$0xff]
    %v259 = vld [vmem:[#allocation3 + $0x50] sm:$0xff]
    %v260 = vld [vmem:[#allocation3 + $0x58] sm:$0xff]
    %v261 = vld [vmem:[#allocation3 + $0x60] sm:$0xff]
    %v262 = vld [vmem:[#allocation3 + $0x68] sm:$0xff]
    %v263 = vld [vmem:[#allocation3 + $0x70] sm:$0xff]
    %v264 = vld [vmem:[#allocation3 + $0x78] sm:$0xff]
    %v265 = vld [vmem:[#allocation3 + $0x80] sm:$0xff]
    %v266 = vld [vmem:[#allocation3 + $0x88] sm:$0xff]
    %v267 = vld [vmem:[#allocation3 + $0x90] sm:$0xff]
    %v268 = vld [vmem:[#allocation3 + $0x98] sm:$0xff]
    %v269 = vld [vmem:[#allocation3 + $0xa0] sm:$0xff]
    %v270 = vld [vmem:[#allocation3 + $0xa8] sm:$0xff]
    %v271 = vld [vmem:[#allocation3 + $0xb0] sm:$0xff]
    %v272 = vld [vmem:[#allocation3 + $0xb8] sm:$0xff]
    %v273 = vld [vmem:[#allocation3 + $0xc0] sm:$0xff]
    %v274 = vld [vmem:[#allocation3 + $0xc8] sm:$0xff]
    %v275 = vld [vmem:[#allocation3 + $0xd0] sm:$0xff]
    %v276 = vld [vmem:[#allocation3 + $0xd8] sm:$0xff]
    %v277 = vld [vmem:[#allocation3 + $0xe0] sm:$0xff]
    %v278 = vld [vmem:[#allocation3 + $0xe8] sm:$0xff]
    %v279 = vld [vmem:[#allocation3 + $0xf0] sm:$0xff]
    %v280 = vld [vmem:[#allocation3 + $0xf8] sm:$0xff]
    %v281 = vld [vmem:[#allocation2] sm:$0xff]
    %v282 = vld [vmem:[#allocation2 + $0x8] sm:$0xff]
    %v283 = vld [vmem:[#allocation2 + $0x10] sm:$0xff]
    %v284 = vld [vmem:[#allocation2 + $0x18] sm:$0xff]
    %v317 = vunpack.c.l.b16 %v249
    %v318 = vunpack.c.h.b16 %v249
    %v319 = vunpack.c.l.b16 %v250
    %v320 = vunpack.c.h.b16 %v250
    %v321 = vunpack.c.l.b16 %v251
    %v322 = vunpack.c.h.b16 %v251
    %v323 = vunpack.c.l.b16 %v252
    %v324 = vunpack.c.h.b16 %v252
    %v325 = vunpack.c.l.b16 %v253
    %v326 = vunpack.c.h.b16 %v253
    %v327 = vunpack.c.l.b16 %v254
    %v328 = vunpack.c.h.b16 %v254
    %v329 = vunpack.c.l.b16 %v255
    %v330 = vunpack.c.h.b16 %v255
    %v331 = vunpack.c.l.b16 %v256
    %v332 = vunpack.c.h.b16 %v256
    %v333 = vunpack.c.l.b16 %v257
    %v334 = vunpack.c.h.b16 %v257
    %v335 = vunpack.c.l.b16 %v258
    %v336 = vunpack.c.h.b16 %v258
    %v337 = vunpack.c.l.b16 %v259
    %v338 = vunpack.c.h.b16 %v259
    %v339 = vunpack.c.l.b16 %v260
    %v340 = vunpack.c.h.b16 %v260
    %v341 = vunpack.c.l.b16 %v261
    %v342 = vunpack.c.h.b16 %v261
    %v343 = vunpack.c.l.b16 %v262
    %v344 = vunpack.c.h.b16 %v262
    %v345 = vunpack.c.l.b16 %v263
    %v346 = vunpack.c.h.b16 %v263
    %v347 = vunpack.c.l.b16 %v264
    %v348 = vunpack.c.h.b16 %v264
    %v349 = vunpack.c.l.b16 %v265
    %v350 = vunpack.c.h.b16 %v265
    %v351 = vunpack.c.l.b16 %v266
    %v352 = vunpack.c.h.b16 %v266
    %v353 = vunpack.c.l.b16 %v267
    %v354 = vunpack.c.h.b16 %v267
    %v355 = vunpack.c.l.b16 %v268
    %v356 = vunpack.c.h.b16 %v268
    %v357 = vunpack.c.l.b16 %v269
    %v358 = vunpack.c.h.b16 %v269
    %v359 = vunpack.c.l.b16 %v270
    %v360 = vunpack.c.h.b16 %v270
    %v361 = vunpack.c.l.b16 %v271
    %v362 = vunpack.c.h.b16 %v271
    %v363 = vunpack.c.l.b16 %v272
    %v364 = vunpack.c.h.b16 %v272
    %v365 = vunpack.c.l.b16 %v273
    %v366 = vunpack.c.h.b16 %v273
    %v367 = vunpack.c.l.b16 %v274
    %v368 = vunpack.c.h.b16 %v274
    %v369 = vunpack.c.l.b16 %v275
    %v370 = vunpack.c.h.b16 %v275
    %v371 = vunpack.c.l.b16 %v276
    %v372 = vunpack.c.h.b16 %v276
    %v373 = vunpack.c.l.b16 %v277
    %v374 = vunpack.c.h.b16 %v277
    %v375 = vunpack.c.l.b16 %v278
    %v376 = vunpack.c.h.b16 %v278
    %v377 = vunpack.c.l.b16 %v279
    %v378 = vunpack.c.h.b16 %v279
    %v379 = vunpack.c.l.b16 %v280
    %v380 = vunpack.c.h.b16 %v280
    %v381 = vpack.c.b16 %v321, %v317
    %v382 = vpack.c.b16 %v322, %v318
    %v383 = vpack.c.b16 %v323, %v319
    %v384 = vpack.c.b16 %v324, %v320
    %v385 = vpack.c.b16 %v329, %v325
    %v386 = vpack.c.b16 %v330, %v326
    %v387 = vpack.c.b16 %v331, %v327
    %v388 = vpack.c.b16 %v332, %v328
    %v389 = vpack.c.b16 %v337, %v333
    %v390 = vpack.c.b16 %v338, %v334
    %v391 = vpack.c.b16 %v339, %v335
    %v392 = vpack.c.b16 %v340, %v336
    %v393 = vpack.c.b16 %v345, %v341
    %v394 = vpack.c.b16 %v346, %v342
    %v395 = vpack.c.b16 %v347, %v343
    %v396 = vpack.c.b16 %v348, %v344
    %v397 = vpack.c.b16 %v353, %v349
    %v398 = vpack.c.b16 %v354, %v350
    %v399 = vpack.c.b16 %v355, %v351
    %v400 = vpack.c.b16 %v356, %v352
    %v401 = vpack.c.b16 %v361, %v357
    %v402 = vpack.c.b16 %v362, %v358
    %v403 = vpack.c.b16 %v363, %v359
    %v404 = vpack.c.b16 %v364, %v360
    %v405 = vpack.c.b16 %v369, %v365
    %v406 = vpack.c.b16 %v370, %v366
    %v407 = vpack.c.b16 %v371, %v367
    %v408 = vpack.c.b16 %v372, %v368
    %v409 = vpack.c.b16 %v377, %v373
    %v410 = vpack.c.b16 %v378, %v374
    %v411 = vpack.c.b16 %v379, %v375
    %v412 = vpack.c.b16 %v380, %v376
    %445 = vmatprep.subr.bf16.mxu0 %v382
    %446 = vmatpush1.bf16.msra.mxu0 %v381
    %447 = vmatprep.subr.bf16.mxu0 %v386
    %448 = vmatpush1.bf16.msra.mxu0 %v385
    %449 = vmatprep.subr.bf16.mxu0 %v390
    %450 = vmatpush1.bf16.msra.mxu0 %v389
    %451 = vmatprep.subr.bf16.mxu0 %v394
    %452 = vmatpush1.bf16.msra.mxu0 %v393
    %453 = vmatprep.subr.bf16.mxu0 %v398
    %454 = vmatpush1.bf16.msra.mxu0 %v397
    %455 = vmatprep.subr.bf16.mxu0 %v402
    %456 = vmatpush1.bf16.msra.mxu0 %v401
    %457 = vmatprep.subr.bf16.mxu0 %v406
    %458 = vmatpush1.bf16.msra.mxu0 %v405
    %459 = vmatprep.subr.bf16.mxu0 %v410
    %460 = vmatpush1.bf16.msra.mxu0 %v409
    %461 = vmatprep.subr.bf16.mxu0 0
    %462 = vmatpush1.bf16.msra.mxu0 0
    %463 = vmatprep.subr.bf16.mxu0 0
    %464 = vmatpush1.bf16.msra.mxu0 0
    %465 = vmatprep.subr.bf16.mxu0 0
    %466 = vmatpush1.bf16.msra.mxu0 0
    %467 = vmatprep.subr.bf16.mxu0 0
    %468 = vmatpush1.bf16.msra.mxu0 0
    %469 = vmatprep.subr.bf16.mxu0 0
    %470 = vmatpush1.bf16.msra.mxu0 0
    %471 = vmatprep.subr.bf16.mxu0 0
    %472 = vmatpush1.bf16.msra.mxu0 0
    %473 = vmatprep.subr.bf16.mxu0 0
    %474 = vmatpush1.bf16.msra.mxu0 0
    %475 = vmatprep.subr.bf16.mxu0 0
    %476 = vmatpush1.bf16.msra.mxu0 0
    %477 = vmatprep.mubr.bf16.mxu0 0
    %478 = vmatmul.mubr.bf16.gmra.mrb[0].mxu0 0
    %v479 = vpop.f32.mrb[0].mxu0
    %v480 = vadd.f32 0.0, %v479
    %v481 = vpop.f32.mrb[0].mxu0
    %v482 = vadd.f32 0.0, %v481
    %v483 = vpop.f32.mrb[0].mxu0
    %v484 = vpop.f32.mrb[0].mxu0
    %485 = vdwg.mxu0
    %486 = vmatprep.subr.bf16.mxu0 %v384
    %487 = vmatpush1.bf16.msra.mxu0 %v383
    %488 = vmatprep.subr.bf16.mxu0 %v388
    %489 = vmatpush1.bf16.msra.mxu0 %v387
    %490 = vmatprep.subr.bf16.mxu0 %v392
    %491 = vmatpush1.bf16.msra.mxu0 %v391
    %492 = vmatprep.subr.bf16.mxu0 %v396
    %493 = vmatpush1.bf16.msra.mxu0 %v395
    %494 = vmatprep.subr.bf16.mxu0 %v400
    %495 = vmatpush1.bf16.msra.mxu0 %v399
    %496 = vmatprep.subr.bf16.mxu0 %v404
    %497 = vmatpush1.bf16.msra.mxu0 %v403
    %498 = vmatprep.subr.bf16.mxu0 %v408
    %499 = vmatpush1.bf16.msra.mxu0 %v407
    %500 = vmatprep.subr.bf16.mxu0 %v412
    %501 = vmatpush1.bf16.msra.mxu0 %v411
    %502 = vmatprep.subr.bf16.mxu0 0
    %503 = vmatpush1.bf16.msra.mxu0 0
    %504 = vmatprep.subr.bf16.mxu0 0
    %505 = vmatpush1.bf16.msra.mxu0 0
    %506 = vmatprep.subr.bf16.mxu0 0
    %507 = vmatpush1.bf16.msra.mxu0 0
    %508 = vmatprep.subr.bf16.mxu0 0
    %509 = vmatpush1.bf16.msra.mxu0 0
    %510 = vmatprep.subr.bf16.mxu0 0
    %511 = vmatpush1.bf16.msra.mxu0 0
    %512 = vmatprep.subr.bf16.mxu0 0
    %513 = vmatpush1.bf16.msra.mxu0 0
    %514 = vmatprep.subr.bf16.mxu0 0
    %515 = vmatpush1.bf16.msra.mxu0 0
    %516 = vmatprep.subr.bf16.mxu0 0
    %517 = vmatpush1.bf16.msra.mxu0 0
    %518 = vmatprep.mubr.bf16.mxu0 0
    %519 = vmatmul.mubr.bf16.gmra.mrb[0].mxu0 0
    %v520 = vpop.f32.mrb[0].mxu0
    %v521 = vadd.f32 0.0, %v520
    %v522 = vpop.f32.mrb[0].mxu0
    %v523 = vadd.f32 0.0, %v522
    %v524 = vpop.f32.mrb[0].mxu0
    %v525 = vpop.f32.mrb[0].mxu0
    %526 = vdwg.mxu0
    %v527 = vadd.f32 %v281, %v480
    %v528 = vadd.f32 %v282, %v482
    %v529 = vadd.f32 %v283, %v521
    %v530 = vadd.f32 %v284, %v523
    %v531 = vxor.u32 %v527, 2147483648
    %v532 = vxor.u32 %v528, 2147483648
    %v533 = vxor.u32 %v529, 2147483648
    %v534 = vmul.f32 %v531, 1.442695
    %v535 = vpow.pop %v534
    %v536 = vmul.f32 %v532, 1.442695
    %v537 = vpow.pop %v536
    %v538 = vmul.f32 %v533, 1.442695
    %v539 = vpow.pop %v538
    %v540 = vadd.f32 %v535, 1.0
    %v541 = vadd.f32 %v537, 1.0
    %v542 = vadd.f32 %v539, 1.0
    %v543 = vrcp.pop %v540
    %v544 = vmul.f32 1.0, %v543
    %v545 = vrcp.pop %v541
    %v546 = vmul.f32 1.0, %v545
    %v547 = vrcp.pop %v542
    %v548 = vmul.f32 1.0, %v547
    %v549 = vtanh.pop %v530
    %v550 = vmul.f32 %v546, 0.0
    %v551 = vmul.f32 %v544, %v549
    %v552 = vadd.f32 %v550, %v551
    %v553 = vtanh.pop %v552
    %v554 = vmul.f32 %v548, %v553
    %s555 = scalar_lea.vmem [#allocation2], 32
    %v556 = vld [vmem:[%s555] sm:$0xff]
    %v557 = vld [vmem:[%s555 + $0x8] sm:$0xff]
    %v558 = vld [vmem:[%s555 + $0x10] sm:$0xff]
    %v559 = vld [vmem:[%s555 + $0x18] sm:$0xff]
    %v560 = vpack.c.bf16 %v554, %v554
    %561 = vmatprep.subr.bf16.mxu0 %v382
    %562 = vmatpush1.bf16.msra.mxu0 %v381
    %563 = vmatprep.subr.bf16.mxu0 %v386
    %564 = vmatpush1.bf16.msra.mxu0 %v385
    %565 = vmatprep.subr.bf16.mxu0 %v390
    %566 = vmatpush1.bf16.msra.mxu0 %v389
    %567 = vmatprep.subr.bf16.mxu0 %v394
    %568 = vmatpush1.bf16.msra.mxu0 %v393
    %569 = vmatprep.subr.bf16.mxu0 %v398
    %570 = vmatpush1.bf16.msra.mxu0 %v397
    %571 = vmatprep.subr.bf16.mxu0 %v402
    %572 = vmatpush1.bf16.msra.mxu0 %v401
    %573 = vmatprep.subr.bf16.mxu0 %v406
    %574 = vmatpush1.bf16.msra.mxu0 %v405
    %575 = vmatprep.subr.bf16.mxu0 %v410
    %576 = vmatpush1.bf16.msra.mxu0 %v409
    %577 = vmatprep.subr.bf16.mxu0 0
    %578 = vmatpush1.bf16.msra.mxu0 0
    %579 = vmatprep.subr.bf16.mxu0 0
    %580 = vmatpush1.bf16.msra.mxu0 0
    %581 = vmatprep.subr.bf16.mxu0 0
    %582 = vmatpush1.bf16.msra.mxu0 0
    %583 = vmatprep.subr.bf16.mxu0 0
    %584 = vmatpush1.bf16.msra.mxu0 0
    %585 = vmatprep.subr.bf16.mxu0 0
    %586 = vmatpush1.bf16.msra.mxu0 0
    %587 = vmatprep.subr.bf16.mxu0 0
    %588 = vmatpush1.bf16.msra.mxu0 0
    %589 = vmatprep.subr.bf16.mxu0 0
    %590 = vmatpush1.bf16.msra.mxu0 0
    %591 = vmatprep.subr.bf16.mxu0 0
    %592 = vmatpush1.bf16.msra.mxu0 0
    %593 = vmatprep.mubr.bf16.mxu0 0
    %594 = vmatmul.mubr.bf16.gmra.mrb[0].mxu0 %v560
    %v595 = vpop.f32.mrb[0].mxu0
    %v596 = vadd.f32 0.0, %v595
    %v597 = vpop.f32.mrb[0].mxu0
    %v598 = vadd.f32 0.0, %v597
    %v599 = vpop.f32.mrb[0].mxu0
    %v600 = vpop.f32.mrb[0].mxu0
    %601 = vdwg.mxu0
    %602 = vmatprep.subr.bf16.mxu0 %v384
    %603 = vmatpush1.bf16.msra.mxu0 %v383
    %604 = vmatprep.subr.bf16.mxu0 %v388
    %605 = vmatpush1.bf16.msra.mxu0 %v387
    %606 = vmatprep.subr.bf16.mxu0 %v392
    %607 = vmatpush1.bf16.msra.mxu0 %v391
    %608 = vmatprep.subr.bf16.mxu0 %v396
    %609 = vmatpush1.bf16.msra.mxu0 %v395
    %610 = vmatprep.subr.bf16.mxu0 %v400
    %611 = vmatpush1.bf16.msra.mxu0 %v399
    %612 = vmatprep.subr.bf16.mxu0 %v404
    %613 = vmatpush1.bf16.msra.mxu0 %v403
    %614 = vmatprep.subr.bf16.mxu0 %v408
    %615 = vmatpush1.bf16.msra.mxu0 %v407
    %616 = vmatprep.subr.bf16.mxu0 %v412
    %617 = vmatpush1.bf16.msra.mxu0 %v411
    %618 = vmatprep.subr.bf16.mxu0 0
    %619 = vmatpush1.bf16.msra.mxu0 0
    %620 = vmatprep.subr.bf16.mxu0 0
    %621 = vmatpush1.bf16.msra.mxu0 0
    %622 = vmatprep.subr.bf16.mxu0 0
    %623 = vmatpush1.bf16.msra.mxu0 0
    %624 = vmatprep.subr.bf16.mxu0 0
    %625 = vmatpush1.bf16.msra.mxu0 0
    %626 = vmatprep.subr.bf16.mxu0 0
    %627 = vmatpush1.bf16.msra.mxu0 0
    %628 = vmatprep.subr.bf16.mxu0 0
    %629 = vmatpush1.bf16.msra.mxu0 0
    %630 = vmatprep.subr.bf16.mxu0 0
    %631 = vmatpush1.bf16.msra.mxu0 0
    %632 = vmatprep.subr.bf16.mxu0 0
    %633 = vmatpush1.bf16.msra.mxu0 0
    %634 = vmatprep.mubr.bf16.mxu0 0
    %635 = vmatmul.mubr.bf16.gmra.mrb[0].mxu0 %v560
    %v636 = vpop.f32.mrb[0].mxu0
    %v637 = vadd.f32 0.0, %v636
    %v638 = vpop.f32.mrb[0].mxu0
    %v639 = vadd.f32 0.0, %v638
    %v640 = vpop.f32.mrb[0].mxu0
    %v641 = vpop.f32.mrb[0].mxu0
    %642 = vdwg.mxu0
    %v643 = vadd.f32 %v556, %v596
    %v644 = vadd.f32 %v557, %v598
    %v645 = vadd.f32 %v558, %v637
    %v646 = vadd.f32 %v559, %v639
    %v647 = vxor.u32 %v643, 2147483648
    %v648 = vxor.u32 %v644, 2147483648
    %v649 = vxor.u32 %v645, 2147483648
    %v650 = vmul.f32 %v647, 1.442695
    %v651 = vpow.pop %v650
    %v652 = vmul.f32 %v648, 1.442695
    %v653 = vpow.pop %v652
    %v654 = vmul.f32 %v649, 1.442695
    %v655 = vpow.pop %v654
    %v656 = vadd.f32 %v651, 1.0
    %v657 = vadd.f32 %v653, 1.0
    %v658 = vadd.f32 %v655, 1.0
    %v659 = vrcp.pop %v656
    %v660 = vmul.f32 1.0, %v659
    %v661 = vrcp.pop %v657
    %v662 = vmul.f32 1.0, %v661
    %v663 = vrcp.pop %v658
    %v664 = vmul.f32 1.0, %v663
    %v665 = vtanh.pop %v646
    %v666 = vmul.f32 %v662, %v552
    %v667 = vmul.f32 %v660, %v665
    %v668 = vadd.f32 %v666, %v667
    %v669 = vtanh.pop %v668
    %v670 = vmul.f32 %v664, %v669
    %s671 = scalar_lea.vmem [#allocation2], 64
    %v672 = vld [vmem:[%s671] sm:$0xff]
    %v673 = vld [vmem:[%s671 + $0x8] sm:$0xff]
    %v674 = vld [vmem:[%s671 + $0x10] sm:$0xff]
    %v675 = vld [vmem:[%s671 + $0x18] sm:$0xff]
    %v676 = vpack.c.bf16 %v670, %v670
    %677 = vmatprep.subr.bf16.mxu0 %v382
    %678 = vmatpush1.bf16.msra.mxu0 %v381
    %679 = vmatprep.subr.bf16.mxu0 %v386
    %680 = vmatpush1.bf16.msra.mxu0 %v385
    %681 = vmatprep.subr.bf16.mxu0 %v390
    %682 = vmatpush1.bf16.msra.mxu0 %v389
    %683 = vmatprep.subr.bf16.mxu0 %v394
    %684 = vmatpush1.bf16.msra.mxu0 %v393
    %685 = vmatprep.subr.bf16.mxu0 %v398
    %686 = vmatpush1.bf16.msra.mxu0 %v397
    %687 = vmatprep.subr.bf16.mxu0 %v402
    %688 = vmatpush1.bf16.msra.mxu0 %v401
    %689 = vmatprep.subr.bf16.mxu0 %v406
    %690 = vmatpush1.bf16.msra.mxu0 %v405
    %691 = vmatprep.subr.bf16.mxu0 %v410
    %692 = vmatpush1.bf16.msra.mxu0 %v409
    %693 = vmatprep.subr.bf16.mxu0 0
    %694 = vmatpush1.bf16.msra.mxu0 0
    %695 = vmatprep.subr.bf16.mxu0 0
    %696 = vmatpush1.bf16.msra.mxu0 0
    %697 = vmatprep.subr.bf16.mxu0 0
    %698 = vmatpush1.bf16.msra.mxu0 0
    %699 = vmatprep.subr.bf16.mxu0 0
    %700 = vmatpush1.bf16.msra.mxu0 0
    %701 = vmatprep.subr.bf16.mxu0 0
    %702 = vmatpush1.bf16.msra.mxu0 0
    %703 = vmatprep.subr.bf16.mxu0 0
    %704 = vmatpush1.bf16.msra.mxu0 0
    %705 = vmatprep.subr.bf16.mxu0 0
    %706 = vmatpush1.bf16.msra.mxu0 0
    %707 = vmatprep.subr.bf16.mxu0 0
    %708 = vmatpush1.bf16.msra.mxu0 0
    %709 = vmatprep.mubr.bf16.mxu0 0
    %710 = vmatmul.mubr.bf16.gmra.mrb[0].mxu0 %v676
    %v711 = vpop.f32.mrb[0].mxu0
    %v712 = vadd.f32 0.0, %v711
    %v713 = vpop.f32.mrb[0].mxu0
    %v714 = vadd.f32 0.0, %v713
    %v715 = vpop.f32.mrb[0].mxu0
    %v716 = vpop.f32.mrb[0].mxu0
    %717 = vdwg.mxu0
    %718 = vmatprep.subr.bf16.mxu0 %v384
    %719 = vmatpush1.bf16.msra.mxu0 %v383
    %720 = vmatprep.subr.bf16.mxu0 %v388
    %721 = vmatpush1.bf16.msra.mxu0 %v387
    %722 = vmatprep.subr.bf16.mxu0 %v392
    %723 = vmatpush1.bf16.msra.mxu0 %v391
    %724 = vmatprep.subr.bf16.mxu0 %v396
    %725 = vmatpush1.bf16.msra.mxu0 %v395
    %726 = vmatprep.subr.bf16.mxu0 %v400
    %727 = vmatpush1.bf16.msra.mxu0 %v399
    %728 = vmatprep.subr.bf16.mxu0 %v404
    %729 = vmatpush1.bf16.msra.mxu0 %v403
    %730 = vmatprep.subr.bf16.mxu0 %v408
    %731 = vmatpush1.bf16.msra.mxu0 %v407
    %732 = vmatprep.subr.bf16.mxu0 %v412
    %733 = vmatpush1.bf16.msra.mxu0 %v411
    %734 = vmatprep.subr.bf16.mxu0 0
    %735 = vmatpush1.bf16.msra.mxu0 0
    %736 = vmatprep.subr.bf16.mxu0 0
    %737 = vmatpush1.bf16.msra.mxu0 0
    %738 = vmatprep.subr.bf16.mxu0 0
    %739 = vmatpush1.bf16.msra.mxu0 0
    %740 = vmatprep.subr.bf16.mxu0 0
    %741 = vmatpush1.bf16.msra.mxu0 0
    %742 = vmatprep.subr.bf16.mxu0 0
    %743 = vmatpush1.bf16.msra.mxu0 0
    %744 = vmatprep.subr.bf16.mxu0 0
    %745 = vmatpush1.bf16.msra.mxu0 0
    %746 = vmatprep.subr.bf16.mxu0 0
    %747 = vmatpush1.bf16.msra.mxu0 0
    %748 = vmatprep.subr.bf16.mxu0 0
    %749 = vmatpush1.bf16.msra.mxu0 0
    %750 = vmatprep.mubr.bf16.mxu0 0
    %751 = vmatmul.mubr.bf16.gmra.mrb[0].mxu0 %v676
    %v752 = vpop.f32.mrb[0].mxu0
    %v753 = vadd.f32 0.0, %v752
    %v754 = vpop.f32.mrb[0].mxu0
    %v755 = vadd.f32 0.0, %v754
    %v756 = vpop.f32.mrb[0].mxu0
    %v757 = vpop.f32.mrb[0].mxu0
    %758 = vdwg.mxu0
    %v759 = vadd.f32 %v672, %v712
    %v760 = vadd.f32 %v673, %v714
    %v761 = vadd.f32 %v674, %v753
    %v762 = vadd.f32 %v675, %v755
    %v763 = vxor.u32 %v759, 2147483648
    %v764 = vxor.u32 %v760, 2147483648
    %v765 = vxor.u32 %v761, 2147483648
    %v766 = vmul.f32 %v763, 1.442695
    %v767 = vpow.pop %v766
    %v768 = vmul.f32 %v764, 1.442695
    %v769 = vpow.pop %v768
    %v770 = vmul.f32 %v765, 1.442695
    %v771 = vpow.pop %v770
    %v772 = vadd.f32 %v767, 1.0
    %v773 = vadd.f32 %v769, 1.0
    %v774 = vadd.f32 %v771, 1.0
    %v775 = vrcp.pop %v772
    %v776 = vmul.f32 1.0, %v775
    %v777 = vrcp.pop %v773
    %v778 = vmul.f32 1.0, %v777
    %v779 = vrcp.pop %v774
    %v780 = vmul.f32 1.0, %v779
    %v781 = vtanh.pop %v762
    %v782 = vmul.f32 %v778, %v668
    %v783 = vmul.f32 %v776, %v781
    %v784 = vadd.f32 %v782, %v783
    %v785 = vtanh.pop %v784
    %v786 = vmul.f32 %v780, %v785
    %s787 = scalar_lea.vmem [#allocation2], 96
    %v788 = vld [vmem:[%s787] sm:$0xff]
    %v789 = vld [vmem:[%s787 + $0x8] sm:$0xff]
    %v790 = vld [vmem:[%s787 + $0x10] sm:$0xff]
    %v791 = vld [vmem:[%s787 + $0x18] sm:$0xff]
    %v792 = vpack.c.bf16 %v786, %v786
    %793 = vmatprep.subr.bf16.mxu0 %v382
    %794 = vmatpush1.bf16.msra.mxu0 %v381
    %795 = vmatprep.subr.bf16.mxu0 %v386
    %796 = vmatpush1.bf16.msra.mxu0 %v385
    %797 = vmatprep.subr.bf16.mxu0 %v390
    %798 = vmatpush1.bf16.msra.mxu0 %v389
    %799 = vmatprep.subr.bf16.mxu0 %v394
    %800 = vmatpush1.bf16.msra.mxu0 %v393
    %801 = vmatprep.subr.bf16.mxu0 %v398
    %802 = vmatpush1.bf16.msra.mxu0 %v397
    %803 = vmatprep.subr.bf16.mxu0 %v402
    %804 = vmatpush1.bf16.msra.mxu0 %v401
    %805 = vmatprep.subr.bf16.mxu0 %v406
    %806 = vmatpush1.bf16.msra.mxu0 %v405
    %807 = vmatprep.subr.bf16.mxu0 %v410
    %808 = vmatpush1.bf16.msra.mxu0 %v409
    %809 = vmatprep.subr.bf16.mxu0 0
    %810 = vmatpush1.bf16.msra.mxu0 0
    %811 = vmatprep.subr.bf16.mxu0 0
    %812 = vmatpush1.bf16.msra.mxu0 0
    %813 = vmatprep.subr.bf16.mxu0 0
    %814 = vmatpush1.bf16.msra.mxu0 0
    %815 = vmatprep.subr.bf16.mxu0 0
    %816 = vmatpush1.bf16.msra.mxu0 0
    %817 = vmatprep.subr.bf16.mxu0 0
    %818 = vmatpush1.bf16.msra.mxu0 0
    %819 = vmatprep.subr.bf16.mxu0 0
    %820 = vmatpush1.bf16.msra.mxu0 0
    %821 = vmatprep.subr.bf16.mxu0 0
    %822 = vmatpush1.bf16.msra.mxu0 0
    %823 = vmatprep.subr.bf16.mxu0 0
    %824 = vmatpush1.bf16.msra.mxu0 0
    %825 = vmatprep.mubr.bf16.mxu0 0
    %826 = vmatmul.mubr.bf16.gmra.mrb[0].mxu0 %v792
    %v827 = vpop.f32.mrb[0].mxu0
    %v828 = vadd.f32 0.0, %v827
    %v829 = vpop.f32.mrb[0].mxu0
    %v830 = vadd.f32 0.0, %v829
    %v831 = vpop.f32.mrb[0].mxu0
    %v832 = vpop.f32.mrb[0].mxu0
    %833 = vdwg.mxu0
    %834 = vmatprep.subr.bf16.mxu0 %v384
    %835 = vmatpush1.bf16.msra.mxu0 %v383
    %836 = vmatprep.subr.bf16.mxu0 %v388
    %837 = vmatpush1.bf16.msra.mxu0 %v387
    %838 = vmatprep.subr.bf16.mxu0 %v392
    %839 = vmatpush1.bf16.msra.mxu0 %v391
    %840 = vmatprep.subr.bf16.mxu0 %v396
    %841 = vmatpush1.bf16.msra.mxu0 %v395
    %842 = vmatprep.subr.bf16.mxu0 %v400
    %843 = vmatpush1.bf16.msra.mxu0 %v399
    %844 = vmatprep.subr.bf16.mxu0 %v404
    %845 = vmatpush1.bf16.msra.mxu0 %v403
    %846 = vmatprep.subr.bf16.mxu0 %v408
    %847 = vmatpush1.bf16.msra.mxu0 %v407
    %848 = vmatprep.subr.bf16.mxu0 %v412
    %849 = vmatpush1.bf16.msra.mxu0 %v411
    %850 = vmatprep.subr.bf16.mxu0 0
    %851 = vmatpush1.bf16.msra.mxu0 0
    %852 = vmatprep.subr.bf16.mxu0 0
    %853 = vmatpush1.bf16.msra.mxu0 0
    %854 = vmatprep.subr.bf16.mxu0 0
    %855 = vmatpush1.bf16.msra.mxu0 0
    %856 = vmatprep.subr.bf16.mxu0 0
    %857 = vmatpush1.bf16.msra.mxu0 0
    %858 = vmatprep.subr.bf16.mxu0 0
    %859 = vmatpush1.bf16.msra.mxu0 0
    %860 = vmatprep.subr.bf16.mxu0 0
    %861 = vmatpush1.bf16.msra.mxu0 0
    %862 = vmatprep.subr.bf16.mxu0 0
    %863 = vmatpush1.bf16.msra.mxu0 0
    %864 = vmatprep.subr.bf16.mxu0 0
    %865 = vmatpush1.bf16.msra.mxu0 0
    %866 = vmatprep.mubr.bf16.mxu0 0
    %867 = vmatmul.mubr.bf16.gmra.mrb[0].mxu0 %v792
    %v868 = vpop.f32.mrb[0].mxu0
    %v869 = vadd.f32 0.0, %v868
    %v870 = vpop.f32.mrb[0].mxu0
    %v871 = vadd.f32 0.0, %v870
    %v872 = vpop.f32.mrb[0].mxu0
    %v873 = vpop.f32.mrb[0].mxu0
    %874 = vdwg.mxu0
    %v875 = vadd.f32 %v788, %v828
    %v876 = vadd.f32 %v789, %v830
    %v877 = vadd.f32 %v790, %v869
    %v878 = vadd.f32 %v791, %v871
    %v879 = vxor.u32 %v875, 2147483648
    %v880 = vxor.u32 %v876, 2147483648
    %v881 = vxor.u32 %v877, 2147483648
    %v882 = vmul.f32 %v879, 1.442695
    %v883 = vpow.pop %v882
    %v884 = vmul.f32 %v880, 1.442695
    %v885 = vpow.pop %v884
    %v886 = vmul.f32 %v881, 1.442695
    %v887 = vpow.pop %v886
    %v888 = vadd.f32 %v883, 1.0
    %v889 = vadd.f32 %v885, 1.0
    %v890 = vadd.f32 %v887, 1.0
    %v891 = vrcp.pop %v888
    %v892 = vmul.f32 1.0, %v891
    %v893 = vrcp.pop %v889
    %v894 = vmul.f32 1.0, %v893
    %v895 = vrcp.pop %v890
    %v896 = vmul.f32 1.0, %v895
    %v897 = vtanh.pop %v878
    %v898 = vmul.f32 %v894, %v784
    %v899 = vmul.f32 %v892, %v897
    %v900 = vadd.f32 %v898, %v899
    %v901 = vtanh.pop %v900
    %v902 = vmul.f32 %v896, %v901
    %s903 = scalar_lea.vmem [#allocation2], 128
    %v904 = vld [vmem:[%s903] sm:$0xff]
    %v905 = vld [vmem:[%s903 + $0x8] sm:$0xff]
    %v906 = vld [vmem:[%s903 + $0x10] sm:$0xff]
    %v907 = vld [vmem:[%s903 + $0x18] sm:$0xff]
    %v908 = vpack.c.bf16 %v902, %v902
    %909 = vmatprep.subr.bf16.mxu0 %v382
    %910 = vmatpush1.bf16.msra.mxu0 %v381
    %911 = vmatprep.subr.bf16.mxu0 %v386
    %912 = vmatpush1.bf16.msra.mxu0 %v385
    %913 = vmatprep.subr.bf16.mxu0 %v390
    %914 = vmatpush1.bf16.msra.mxu0 %v389
    %915 = vmatprep.subr.bf16.mxu0 %v394
    %916 = vmatpush1.bf16.msra.mxu0 %v393
    %917 = vmatprep.subr.bf16.mxu0 %v398
    %918 = vmatpush1.bf16.msra.mxu0 %v397
    %919 = vmatprep.subr.bf16.mxu0 %v402
    %920 = vmatpush1.bf16.msra.mxu0 %v401
    %921 = vmatprep.subr.bf16.mxu0 %v406
    %922 = vmatpush1.bf16.msra.mxu0 %v405
    %923 = vmatprep.subr.bf16.mxu0 %v410
    %924 = vmatpush1.bf16.msra.mxu0 %v409
    %925 = vmatprep.subr.bf16.mxu0 0
    %926 = vmatpush1.bf16.msra.mxu0 0
    %927 = vmatprep.subr.bf16.mxu0 0
    %928 = vmatpush1.bf16.msra.mxu0 0
    %929 = vmatprep.subr.bf16.mxu0 0
    %930 = vmatpush1.bf16.msra.mxu0 0
    %931 = vmatprep.subr.bf16.mxu0 0
    %932 = vmatpush1.bf16.msra.mxu0 0
    %933 = vmatprep.subr.bf16.mxu0 0
    %934 = vmatpush1.bf16.msra.mxu0 0
    %935 = vmatprep.subr.bf16.mxu0 0
    %936 = vmatpush1.bf16.msra.mxu0 0
    %937 = vmatprep.subr.bf16.mxu0 0
    %938 = vmatpush1.bf16.msra.mxu0 0
    %939 = vmatprep.subr.bf16.mxu0 0
    %940 = vmatpush1.bf16.msra.mxu0 0
    %941 = vmatprep.mubr.bf16.mxu0 0
    %942 = vmatmul.mubr.bf16.gmra.mrb[0].mxu0 %v908
    %v943 = vpop.f32.mrb[0].mxu0
    %v944 = vadd.f32 0.0, %v943
    %v945 = vpop.f32.mrb[0].mxu0
    %v946 = vadd.f32 0.0, %v945
    %v947 = vpop.f32.mrb[0].mxu0
    %v948 = vpop.f32.mrb[0].mxu0
    %949 = vdwg.mxu0
    %950 = vmatprep.subr.bf16.mxu0 %v384
    %951 = vmatpush1.bf16.msra.mxu0 %v383
    %952 = vmatprep.subr.bf16.mxu0 %v388
    %953 = vmatpush1.bf16.msra.mxu0 %v387
    %954 = vmatprep.subr.bf16.mxu0 %v392
    %955 = vmatpush1.bf16.msra.mxu0 %v391
    %956 = vmatprep.subr.bf16.mxu0 %v396
    %957 = vmatpush1.bf16.msra.mxu0 %v395
    %958 = vmatprep.subr.bf16.mxu0 %v400
    %959 = vmatpush1.bf16.msra.mxu0 %v399
    %960 = vmatprep.subr.bf16.mxu0 %v404
    %961 = vmatpush1.bf16.msra.mxu0 %v403
    %962 = vmatprep.subr.bf16.mxu0 %v408
    %963 = vmatpush1.bf16.msra.mxu0 %v407
    %964 = vmatprep.subr.bf16.mxu0 %v412
    %965 = vmatpush1.bf16.msra.mxu0 %v411
    %966 = vmatprep.subr.bf16.mxu0 0
    %967 = vmatpush1.bf16.msra.mxu0 0
    %968 = vmatprep.subr.bf16.mxu0 0
    %969 = vmatpush1.bf16.msra.mxu0 0
    %970 = vmatprep.subr.bf16.mxu0 0
    %971 = vmatpush1.bf16.msra.mxu0 0
    %972 = vmatprep.subr.bf16.mxu0 0
    %973 = vmatpush1.bf16.msra.mxu0 0
    %974 = vmatprep.subr.bf16.mxu0 0
    %975 = vmatpush1.bf16.msra.mxu0 0
    %976 = vmatprep.subr.bf16.mxu0 0
    %977 = vmatpush1.bf16.msra.mxu0 0
    %978 = vmatprep.subr.bf16.mxu0 0
    %979 = vmatpush1.bf16.msra.mxu0 0
    %980 = vmatprep.subr.bf16.mxu0 0
    %981 = vmatpush1.bf16.msra.mxu0 0
    %982 = vmatprep.mubr.bf16.mxu0 0
    %983 = vmatmul.mubr.bf16.gmra.mrb[0].mxu0 %v908
    %v984 = vpop.f32.mrb[0].mxu0
    %v985 = vadd.f32 0.0, %v984
    %v986 = vpop.f32.mrb[0].mxu0
    %v987 = vadd.f32 0.0, %v986
    %v988 = vpop.f32.mrb[0].mxu0
    %v989 = vpop.f32.mrb[0].mxu0
    %990 = vdwg.mxu0
    %v991 = vadd.f32 %v904, %v944
    %v992 = vadd.f32 %v905, %v946
    %v993 = vadd.f32 %v906, %v985
    %v994 = vadd.f32 %v907, %v987
    %v995 = vxor.u32 %v991, 2147483648
    %v996 = vxor.u32 %v992, 2147483648
    %v997 = vxor.u32 %v993, 2147483648
    %v998 = vmul.f32 %v995, 1.442695
    %v999 = vpow.pop %v998
    %v1000 = vmul.f32 %v996, 1.442695
    %v1001 = vpow.pop %v1000
    %v1002 = vmul.f32 %v997, 1.442695
    %v1003 = vpow.pop %v1002
    %v1004 = vadd.f32 %v999, 1.0
    %v1005 = vadd.f32 %v1001, 1.0
    %v1006 = vadd.f32 %v1003, 1.0
    %v1007 = vrcp.pop %v1004
    %v1008 = vmul.f32 1.0, %v1007
    %v1009 = vrcp.pop %v1005
    %v1010 = vmul.f32 1.0, %v1009
    %v1011 = vrcp.pop %v1006
    %v1012 = vmul.f32 1.0, %v1011
    %v1013 = vtanh.pop %v994
    %v1014 = vmul.f32 %v1010, %v900
    %v1015 = vmul.f32 %v1008, %v1013
    %v1016 = vadd.f32 %v1014, %v1015
    %v1017 = vtanh.pop %v1016
    %v1018 = vmul.f32 %v1012, %v1017
    %s1019 = scalar_lea.vmem [#allocation2], 160
    %v1020 = vld [vmem:[%s1019] sm:$0xff]
    %v1021 = vld [vmem:[%s1019 + $0x8] sm:$0xff]
    %v1022 = vld [vmem:[%s1019 + $0x10] sm:$0xff]
    %v1023 = vld [vmem:[%s1019 + $0x18] sm:$0xff]
    %v1024 = vpack.c.bf16 %v1018, %v1018
    %1025 = vmatprep.subr.bf16.mxu0 %v382
    %1026 = vmatpush1.bf16.msra.mxu0 %v381
    %1027 = vmatprep.subr.bf16.mxu0 %v386
    %1028 = vmatpush1.bf16.msra.mxu0 %v385
    %1029 = vmatprep.subr.bf16.mxu0 %v390
    %1030 = vmatpush1.bf16.msra.mxu0 %v389
    %1031 = vmatprep.subr.bf16.mxu0 %v394
    %1032 = vmatpush1.bf16.msra.mxu0 %v393
    %1033 = vmatprep.subr.bf16.mxu0 %v398
    %1034 = vmatpush1.bf16.msra.mxu0 %v397
    %1035 = vmatprep.subr.bf16.mxu0 %v402
    %1036 = vmatpush1.bf16.msra.mxu0 %v401
    %1037 = vmatprep.subr.bf16.mxu0 %v406
    %1038 = vmatpush1.bf16.msra.mxu0 %v405
    %1039 = vmatprep.subr.bf16.mxu0 %v410
    %1040 = vmatpush1.bf16.msra.mxu0 %v409
    %1041 = vmatprep.subr.bf16.mxu0 0
    %1042 = vmatpush1.bf16.msra.mxu0 0
    %1043 = vmatprep.subr.bf16.mxu0 0
    %1044 = vmatpush1.bf16.msra.mxu0 0
    %1045 = vmatprep.subr.bf16.mxu0 0
    %1046 = vmatpush1.bf16.msra.mxu0 0
    %1047 = vmatprep.subr.bf16.mxu0 0
    %1048 = vmatpush1.bf16.msra.mxu0 0
    %1049 = vmatprep.subr.bf16.mxu0 0
    %1050 = vmatpush1.bf16.msra.mxu0 0
    %1051 = vmatprep.subr.bf16.mxu0 0
    %1052 = vmatpush1.bf16.msra.mxu0 0
    %1053 = vmatprep.subr.bf16.mxu0 0
    %1054 = vmatpush1.bf16.msra.mxu0 0
    %1055 = vmatprep.subr.bf16.mxu0 0
    %1056 = vmatpush1.bf16.msra.mxu0 0
    %1057 = vmatprep.mubr.bf16.mxu0 0
    %1058 = vmatmul.mubr.bf16.gmra.mrb[0].mxu0 %v1024
    %v1059 = vpop.f32.mrb[0].mxu0
    %v1060 = vadd.f32 0.0, %v1059
    %v1061 = vpop.f32.mrb[0].mxu0
    %v1062 = vadd.f32 0.0, %v1061
    %v1063 = vpop.f32.mrb[0].mxu0
    %v1064 = vpop.f32.mrb[0].mxu0
    %1065 = vdwg.mxu0
    %1066 = vmatprep.subr.bf16.mxu0 %v384
    %1067 = vmatpush1.bf16.msra.mxu0 %v383
    %1068 = vmatprep.subr.bf16.mxu0 %v388
    %1069 = vmatpush1.bf16.msra.mxu0 %v387
    %1070 = vmatprep.subr.bf16.mxu0 %v392
    %1071 = vmatpush1.bf16.msra.mxu0 %v391
    %1072 = vmatprep.subr.bf16.mxu0 %v396
    %1073 = vmatpush1.bf16.msra.mxu0 %v395
    %1074 = vmatprep.subr.bf16.mxu0 %v400
    %1075 = vmatpush1.bf16.msra.mxu0 %v399
    %1076 = vmatprep.subr.bf16.mxu0 %v404
    %1077 = vmatpush1.bf16.msra.mxu0 %v403
    %1078 = vmatprep.subr.bf16.mxu0 %v408
    %1079 = vmatpush1.bf16.msra.mxu0 %v407
    %1080 = vmatprep.subr.bf16.mxu0 %v412
    %1081 = vmatpush1.bf16.msra.mxu0 %v411
    %1082 = vmatprep.subr.bf16.mxu0 0
    %1083 = vmatpush1.bf16.msra.mxu0 0
    %1084 = vmatprep.subr.bf16.mxu0 0
    %1085 = vmatpush1.bf16.msra.mxu0 0
    %1086 = vmatprep.subr.bf16.mxu0 0
    %1087 = vmatpush1.bf16.msra.mxu0 0
    %1088 = vmatprep.subr.bf16.mxu0 0
    %1089 = vmatpush1.bf16.msra.mxu0 0
    %1090 = vmatprep.subr.bf16.mxu0 0
    %1091 = vmatpush1.bf16.msra.mxu0 0
    %1092 = vmatprep.subr.bf16.mxu0 0
    %1093 = vmatpush1.bf16.msra.mxu0 0
    %1094 = vmatprep.subr.bf16.mxu0 0
    %1095 = vmatpush1.bf16.msra.mxu0 0
    %1096 = vmatprep.subr.bf16.mxu0 0
    %1097 = vmatpush1.bf16.msra.mxu0 0
    %1098 = vmatprep.mubr.bf16.mxu0 0
    %1099 = vmatmul.mubr.bf16.gmra.mrb[0].mxu0 %v1024
    %v1100 = vpop.f32.mrb[0].mxu0
    %v1101 = vadd.f32 0.0, %v1100
    %v1102 = vpop.f32.mrb[0].mxu0
    %v1103 = vadd.f32 0.0, %v1102
    %v1104 = vpop.f32.mrb[0].mxu0
    %v1105 = vpop.f32.mrb[0].mxu0
    %1106 = vdwg.mxu0
    %v1107 = vadd.f32 %v1020, %v1060
    %v1108 = vadd.f32 %v1021, %v1062
    %v1109 = vadd.f32 %v1022, %v1101
    %v1110 = vadd.f32 %v1023, %v1103
    %v1111 = vxor.u32 %v1107, 2147483648
    %v1112 = vxor.u32 %v1108, 2147483648
    %v1113 = vxor.u32 %v1109, 2147483648
    %v1114 = vmul.f32 %v1111, 1.442695
    %v1115 = vpow.pop %v1114
    %v1116 = vmul.f32 %v1112, 1.442695
    %v1117 = vpow.pop %v1116
    %v1118 = vmul.f32 %v1113, 1.442695
    %v1119 = vpow.pop %v1118
    %v1120 = vadd.f32 %v1115, 1.0
    %v1121 = vadd.f32 %v1117, 1.0
    %v1122 = vadd.f32 %v1119, 1.0
    %v1123 = vrcp.pop %v1120
    %v1124 = vmul.f32 1.0, %v1123
    %v1125 = vrcp.pop %v1121
    %v1126 = vmul.f32 1.0, %v1125
    %v1127 = vrcp.pop %v1122
    %v1128 = vmul.f32 1.0, %v1127
    %v1129 = vtanh.pop %v1110
    %v1130 = vmul.f32 %v1126, %v1016
    %v1131 = vmul.f32 %v1124, %v1129
    %v1132 = vadd.f32 %v1130, %v1131
    %v1133 = vtanh.pop %v1132
    %v1134 = vmul.f32 %v1128, %v1133
    %s1135 = scalar_lea.vmem [#allocation2], 192
    %v1136 = vld [vmem:[%s1135] sm:$0xff]
    %v1137 = vld [vmem:[%s1135 + $0x8] sm:$0xff]
    %v1138 = vld [vmem:[%s1135 + $0x10] sm:$0xff]
    %v1139 = vld [vmem:[%s1135 + $0x18] sm:$0xff]
    %v1140 = vpack.c.bf16 %v1134, %v1134
    %1141 = vmatprep.subr.bf16.mxu0 %v382
    %1142 = vmatpush1.bf16.msra.mxu0 %v381
    %1143 = vmatprep.subr.bf16.mxu0 %v386
    %1144 = vmatpush1.bf16.msra.mxu0 %v385
    %1145 = vmatprep.subr.bf16.mxu0 %v390
    %1146 = vmatpush1.bf16.msra.mxu0 %v389
    %1147 = vmatprep.subr.bf16.mxu0 %v394
    %1148 = vmatpush1.bf16.msra.mxu0 %v393
    %1149 = vmatprep.subr.bf16.mxu0 %v398
    %1150 = vmatpush1.bf16.msra.mxu0 %v397
    %1151 = vmatprep.subr.bf16.mxu0 %v402
    %1152 = vmatpush1.bf16.msra.mxu0 %v401
    %1153 = vmatprep.subr.bf16.mxu0 %v406
    %1154 = vmatpush1.bf16.msra.mxu0 %v405
    %1155 = vmatprep.subr.bf16.mxu0 %v410
    %1156 = vmatpush1.bf16.msra.mxu0 %v409
    %1157 = vmatprep.subr.bf16.mxu0 0
    %1158 = vmatpush1.bf16.msra.mxu0 0
    %1159 = vmatprep.subr.bf16.mxu0 0
    %1160 = vmatpush1.bf16.msra.mxu0 0
    %1161 = vmatprep.subr.bf16.mxu0 0
    %1162 = vmatpush1.bf16.msra.mxu0 0
    %1163 = vmatprep.subr.bf16.mxu0 0
    %1164 = vmatpush1.bf16.msra.mxu0 0
    %1165 = vmatprep.subr.bf16.mxu0 0
    %1166 = vmatpush1.bf16.msra.mxu0 0
    %1167 = vmatprep.subr.bf16.mxu0 0
    %1168 = vmatpush1.bf16.msra.mxu0 0
    %1169 = vmatprep.subr.bf16.mxu0 0
    %1170 = vmatpush1.bf16.msra.mxu0 0
    %1171 = vmatprep.subr.bf16.mxu0 0
    %1172 = vmatpush1.bf16.msra.mxu0 0
    %1173 = vmatprep.mubr.bf16.mxu0 0
    %1174 = vmatmul.mubr.bf16.gmra.mrb[0].mxu0 %v1140
    %v1175 = vpop.f32.mrb[0].mxu0
    %v1176 = vadd.f32 0.0, %v1175
    %v1177 = vpop.f32.mrb[0].mxu0
    %v1178 = vadd.f32 0.0, %v1177
    %v1179 = vpop.f32.mrb[0].mxu0
    %v1180 = vpop.f32.mrb[0].mxu0
    %1181 = vdwg.mxu0
    %1182 = vmatprep.subr.bf16.mxu0 %v384
    %1183 = vmatpush1.bf16.msra.mxu0 %v383
    %1184 = vmatprep.subr.bf16.mxu0 %v388
    %1185 = vmatpush1.bf16.msra.mxu0 %v387
    %1186 = vmatprep.subr.bf16.mxu0 %v392
    %1187 = vmatpush1.bf16.msra.mxu0 %v391
    %1188 = vmatprep.subr.bf16.mxu0 %v396
    %1189 = vmatpush1.bf16.msra.mxu0 %v395
    %1190 = vmatprep.subr.bf16.mxu0 %v400
    %1191 = vmatpush1.bf16.msra.mxu0 %v399
    %1192 = vmatprep.subr.bf16.mxu0 %v404
    %1193 = vmatpush1.bf16.msra.mxu0 %v403
    %1194 = vmatprep.subr.bf16.mxu0 %v408
    %1195 = vmatpush1.bf16.msra.mxu0 %v407
    %1196 = vmatprep.subr.bf16.mxu0 %v412
    %1197 = vmatpush1.bf16.msra.mxu0 %v411
    %1198 = vmatprep.subr.bf16.mxu0 0
    %1199 = vmatpush1.bf16.msra.mxu0 0
    %1200 = vmatprep.subr.bf16.mxu0 0
    %1201 = vmatpush1.bf16.msra.mxu0 0
    %1202 = vmatprep.subr.bf16.mxu0 0
    %1203 = vmatpush1.bf16.msra.mxu0 0
    %1204 = vmatprep.subr.bf16.mxu0 0
    %1205 = vmatpush1.bf16.msra.mxu0 0
    %1206 = vmatprep.subr.bf16.mxu0 0
    %1207 = vmatpush1.bf16.msra.mxu0 0
    %1208 = vmatprep.subr.bf16.mxu0 0
    %1209 = vmatpush1.bf16.msra.mxu0 0
    %1210 = vmatprep.subr.bf16.mxu0 0
    %1211 = vmatpush1.bf16.msra.mxu0 0
    %1212 = vmatprep.subr.bf16.mxu0 0
    %1213 = vmatpush1.bf16.msra.mxu0 0
    %1214 = vmatprep.mubr.bf16.mxu0 0
    %1215 = vmatmul.mubr.bf16.gmra.mrb[0].mxu0 %v1140
    %v1216 = vpop.f32.mrb[0].mxu0
    %v1217 = vadd.f32 0.0, %v1216
    %v1218 = vpop.f32.mrb[0].mxu0
    %v1219 = vadd.f32 0.0, %v1218
    %v1220 = vpop.f32.mrb[0].mxu0
    %v1221 = vpop.f32.mrb[0].mxu0
    %1222 = vdwg.mxu0
    %v1223 = vadd.f32 %v1136, %v1176
    %v1224 = vadd.f32 %v1137, %v1178
    %v1225 = vadd.f32 %v1138, %v1217
    %v1226 = vadd.f32 %v1139, %v1219
    %v1227 = vxor.u32 %v1223, 2147483648
    %v1228 = vxor.u32 %v1224, 2147483648
    %v1229 = vxor.u32 %v1225, 2147483648
    %v1230 = vmul.f32 %v1227, 1.442695
    %v1231 = vpow.pop %v1230
    %v1232 = vmul.f32 %v1228, 1.442695
    %v1233 = vpow.pop %v1232
    %v1234 = vmul.f32 %v1229, 1.442695
    %v1235 = vpow.pop %v1234
    %v1236 = vadd.f32 %v1231, 1.0
    %v1237 = vadd.f32 %v1233, 1.0
    %v1238 = vadd.f32 %v1235, 1.0
    %v1239 = vrcp.pop %v1236
    %v1240 = vmul.f32 1.0, %v1239
    %v1241 = vrcp.pop %v1237
    %v1242 = vmul.f32 1.0, %v1241
    %v1243 = vrcp.pop %v1238
    %v1244 = vmul.f32 1.0, %v1243
    %v1245 = vtanh.pop %v1226
    %v1246 = vmul.f32 %v1242, %v1132
    %v1247 = vmul.f32 %v1240, %v1245
    %v1248 = vadd.f32 %v1246, %v1247
    %v1249 = vtanh.pop %v1248
    %v1250 = vmul.f32 %v1244, %v1249
    %s1251 = scalar_lea.vmem [#allocation2], 224
    %v1252 = vld [vmem:[%s1251] sm:$0xff]
    %v1253 = vld [vmem:[%s1251 + $0x8] sm:$0xff]
    %v1254 = vld [vmem:[%s1251 + $0x10] sm:$0xff]
    %v1255 = vld [vmem:[%s1251 + $0x18] sm:$0xff]
    %v1256 = vpack.c.bf16 %v1250, %v1250
    %1257 = vmatprep.subr.bf16.mxu0 %v382
    %1258 = vmatpush1.bf16.msra.mxu0 %v381
    %1259 = vmatprep.subr.bf16.mxu0 %v386
    %1260 = vmatpush1.bf16.msra.mxu0 %v385
    %1261 = vmatprep.subr.bf16.mxu0 %v390
    %1262 = vmatpush1.bf16.msra.mxu0 %v389
    %1263 = vmatprep.subr.bf16.mxu0 %v394
    %1264 = vmatpush1.bf16.msra.mxu0 %v393
    %1265 = vmatprep.subr.bf16.mxu0 %v398
    %1266 = vmatpush1.bf16.msra.mxu0 %v397
    %1267 = vmatprep.subr.bf16.mxu0 %v402
    %1268 = vmatpush1.bf16.msra.mxu0 %v401
    %1269 = vmatprep.subr.bf16.mxu0 %v406
    %1270 = vmatpush1.bf16.msra.mxu0 %v405
    %1271 = vmatprep.subr.bf16.mxu0 %v410
    %1272 = vmatpush1.bf16.msra.mxu0 %v409
    %1273 = vmatprep.subr.bf16.mxu0 0
    %1274 = vmatpush1.bf16.msra.mxu0 0
    %1275 = vmatprep.subr.bf16.mxu0 0
    %1276 = vmatpush1.bf16.msra.mxu0 0
    %1277 = vmatprep.subr.bf16.mxu0 0
    %1278 = vmatpush1.bf16.msra.mxu0 0
    %1279 = vmatprep.subr.bf16.mxu0 0
    %1280 = vmatpush1.bf16.msra.mxu0 0
    %1281 = vmatprep.subr.bf16.mxu0 0
    %1282 = vmatpush1.bf16.msra.mxu0 0
    %1283 = vmatprep.subr.bf16.mxu0 0
    %1284 = vmatpush1.bf16.msra.mxu0 0
    %1285 = vmatprep.subr.bf16.mxu0 0
    %1286 = vmatpush1.bf16.msra.mxu0 0
    %1287 = vmatprep.subr.bf16.mxu0 0
    %1288 = vmatpush1.bf16.msra.mxu0 0
    %1289 = vmatprep.mubr.bf16.mxu0 0
    %1290 = vmatmul.mubr.bf16.gmra.mrb[0].mxu0 %v1256
    %v1291 = vpop.f32.mrb[0].mxu0
    %v1292 = vadd.f32 0.0, %v1291
    %v1293 = vpop.f32.mrb[0].mxu0
    %v1294 = vadd.f32 0.0, %v1293
    %v1295 = vpop.f32.mrb[0].mxu0
    %v1296 = vpop.f32.mrb[0].mxu0
    %1297 = vdwg.mxu0
    %1298 = vmatprep.subr.bf16.mxu0 %v384
    %1299 = vmatpush1.bf16.msra.mxu0 %v383
    %1300 = vmatprep.subr.bf16.mxu0 %v388
    %1301 = vmatpush1.bf16.msra.mxu0 %v387
    %1302 = vmatprep.subr.bf16.mxu0 %v392
    %1303 = vmatpush1.bf16.msra.mxu0 %v391
    %1304 = vmatprep.subr.bf16.mxu0 %v396
    %1305 = vmatpush1.bf16.msra.mxu0 %v395
    %1306 = vmatprep.subr.bf16.mxu0 %v400
    %1307 = vmatpush1.bf16.msra.mxu0 %v399
    %1308 = vmatprep.subr.bf16.mxu0 %v404
    %1309 = vmatpush1.bf16.msra.mxu0 %v403
    %1310 = vmatprep.subr.bf16.mxu0 %v408
    %1311 = vmatpush1.bf16.msra.mxu0 %v407
    %1312 = vmatprep.subr.bf16.mxu0 %v412
    %1313 = vmatpush1.bf16.msra.mxu0 %v411
    %1314 = vmatprep.subr.bf16.mxu0 0
    %1315 = vmatpush1.bf16.msra.mxu0 0
    %1316 = vmatprep.subr.bf16.mxu0 0
    %1317 = vmatpush1.bf16.msra.mxu0 0
    %1318 = vmatprep.subr.bf16.mxu0 0
    %1319 = vmatpush1.bf16.msra.mxu0 0
    %1320 = vmatprep.subr.bf16.mxu0 0
    %1321 = vmatpush1.bf16.msra.mxu0 0
    %1322 = vmatprep.subr.bf16.mxu0 0
    %1323 = vmatpush1.bf16.msra.mxu0 0
    %1324 = vmatprep.subr.bf16.mxu0 0
    %1325 = vmatpush1.bf16.msra.mxu0 0
    %1326 = vmatprep.subr.bf16.mxu0 0
    %1327 = vmatpush1.bf16.msra.mxu0 0
    %1328 = vmatprep.subr.bf16.mxu0 0
    %1329 = vmatpush1.bf16.msra.mxu0 0
    %1330 = vmatprep.mubr.bf16.mxu0 0
    %1331 = vmatmul.mubr.bf16.gmra.mrb[0].mxu0 %v1256
    %v1332 = vpop.f32.mrb[0].mxu0
    %v1333 = vadd.f32 0.0, %v1332
    %v1334 = vpop.f32.mrb[0].mxu0
    %v1335 = vadd.f32 0.0, %v1334
    %v1336 = vpop.f32.mrb[0].mxu0
    %v1337 = vpop.f32.mrb[0].mxu0
    %1338 = vdwg.mxu0
    %v1339 = vadd.f32 %v1252, %v1292
    %v1340 = vadd.f32 %v1253, %v1294
    %v1341 = vadd.f32 %v1254, %v1333
    %v1342 = vadd.f32 %v1255, %v1335
    %v1343 = vxor.u32 %v1339, 2147483648
    %v1344 = vxor.u32 %v1340, 2147483648
    %v1345 = vxor.u32 %v1341, 2147483648
    %v1346 = vmul.f32 %v1343, 1.442695
    %v1347 = vpow.pop %v1346
    %v1348 = vmul.f32 %v1344, 1.442695
    %v1349 = vpow.pop %v1348
    %v1350 = vmul.f32 %v1345, 1.442695
    %v1351 = vpow.pop %v1350
    %v1352 = vadd.f32 %v1347, 1.0
    %v1353 = vadd.f32 %v1349, 1.0
    %v1354 = vadd.f32 %v1351, 1.0
    %v1355 = vrcp.pop %v1352
    %v1356 = vmul.f32 1.0, %v1355
    %v1357 = vrcp.pop %v1353
    %v1358 = vmul.f32 1.0, %v1357
    %v1359 = vrcp.pop %v1354
    %v1360 = vmul.f32 1.0, %v1359
    %v1361 = vtanh.pop %v1342
    %v1362 = vmul.f32 %v1358, %v1248
    %v1363 = vmul.f32 %v1356, %v1361
    %v1364 = vadd.f32 %v1362, %v1363
    %v1365 = vtanh.pop %v1364
    %v1366 = vmul.f32 %v1360, %v1365
    %1367 = vmatprep.subr.mxu0 0.0
    %1368 = vmatpush1.msra.mxu0 %v46
    %1369 = vmatprep.subr.mxu0 0.0
    %1370 = vmatpush1.msra.mxu0 %v47
    %1371 = vmatprep.subr.mxu0 0.0
    %1372 = vmatpush1.msra.mxu0 %v48
    %1373 = vmatprep.subr.mxu0 0.0
    %1374 = vmatpush1.msra.mxu0 %v49
    %1375 = vmatprep.subr.mxu0 0.0
    %1376 = vmatpush1.msra.mxu0 %v50
    %1377 = vmatprep.subr.mxu0 0.0
    %1378 = vmatpush1.msra.mxu0 %v51
    %1379 = vmatprep.subr.mxu0 0.0
    %1380 = vmatpush1.msra.mxu0 %v52
    %1381 = vmatprep.subr.mxu0 0.0
    %1382 = vmatpush1.msra.mxu0 %v53
    %1383 = vmatprep.subr.mxu0 0.0
    %1384 = vmatpush1.msra.mxu0 %v54
    %1385 = vmatprep.subr.mxu0 0.0
    %1386 = vmatpush1.msra.mxu0 %v55
    %1387 = vmatprep.subr.mxu0 0.0
    %1388 = vmatpush1.msra.mxu0 %v56
    %1389 = vmatprep.subr.mxu0 0.0
    %1390 = vmatpush1.msra.mxu0 %v57
    %1391 = vmatprep.subr.mxu0 0.0
    %1392 = vmatpush1.msra.mxu0 %v58
    %1393 = vmatprep.subr.mxu0 0.0
    %1394 = vmatpush1.msra.mxu0 %v59
    %1395 = vmatprep.subr.mxu0 0.0
    %1396 = vmatpush1.msra.mxu0 %v60
    %1397 = vmatprep.subr.mxu0 0.0
    %1398 = vmatpush1.msra.mxu0 %v61
    %1399 = vmatprep.subr.mxu0 0.0
    %1400 = vmatpush1.msra.mxu0 0.0
    %1401 = vmatprep.subr.mxu0 0.0
    %1402 = vmatpush1.msra.mxu0 0.0
    %1403 = vmatprep.subr.mxu0 0.0
    %1404 = vmatpush1.msra.mxu0 0.0
    %1405 = vmatprep.subr.mxu0 0.0
    %1406 = vmatpush1.msra.mxu0 0.0
    %1407 = vmatprep.subr.mxu0 0.0
    %1408 = vmatpush1.msra.mxu0 0.0
    %1409 = vmatprep.subr.mxu0 0.0
    %1410 = vmatpush1.msra.mxu0 0.0
    %1411 = vmatprep.subr.mxu0 0.0
    %1412 = vmatpush1.msra.mxu0 0.0
    %1413 = vmatprep.subr.mxu0 0.0
    %1414 = vmatpush1.msra.mxu0 0.0
    %1415 = vmatprep.subr.mxu0 0.0
    %1416 = vmatpush1.msra.mxu0 0.0
    %1417 = vmatprep.subr.mxu0 0.0
    %1418 = vmatpush1.msra.mxu0 0.0
    %1419 = vmatprep.subr.mxu0 0.0
    %1420 = vmatpush1.msra.mxu0 0.0
    %1421 = vmatprep.subr.mxu0 0.0
    %1422 = vmatpush1.msra.mxu0 0.0
    %1423 = vmatprep.subr.mxu0 0.0
    %1424 = vmatpush1.msra.mxu0 0.0
    %1425 = vmatprep.subr.mxu0 0.0
    %1426 = vmatpush1.msra.mxu0 0.0
    %1427 = vmatprep.subr.mxu0 0.0
    %1428 = vmatpush1.msra.mxu0 0.0
    %1429 = vmatprep.subr.mxu0 0.0
    %1430 = vmatpush1.msra.mxu0 0.0
    %1431 = vmatprep.mubr.f32.mxu0 0.0
    %1432 = vmatmul.mubr.f32.gmra.mrb[0].mxu0 %v1366
    %v1433 = vpop.f32.mrb[0].mxu0
    %v1434 = vadd.f32 %v62, %v1433
    %v1435 = vpop.f32.mrb[0].mxu0
    %1436 = vdwg.mxu0
    %1437 = vst [vmem:[%s3] sm:$0xff] %v1434
    // Predicated region
    $region22: #{_forward_impl.1} parent=1 // pred_check
      _
    $region23: #{_forward_impl.1} parent=1 // pred_check_branch
      %1439 = sbr.rel (0) target = $region25
    $region24: #{_forward_impl.1} parent=1 // pred_region
      _
    $region25: #{_forward_impl.1} parent=1 // pred_fallthru
      _
    // Predicated region
    $region26: #{_forward_impl.1} parent=1 // pred_check
      _
    $region27: #{_forward_impl.1} parent=1 // pred_check_branch
      %1441 = sbr.rel (0) target = $region29
    $region28: #{_forward_impl.1} parent=1 // pred_region
      _
    $region29: #{_forward_impl.1} parent=1 // pred_fallthru
      _
    %1442 = vsyncpa [#allocation4], 1
    %1443 = vsyncpa [#allocation6], 1

</llo_original>
